<compile_context>
chip_gen: v7x
topology: tpu7x:2x2x1
jax: 0.10.0
libtpu: 0.0.40
codegen_flags: <defaults>
</compile_context>

<pallas_src>
import functools

import jax
import jax.numpy as jnp
from jax.experimental import pallas as pl
from jax.experimental.pallas import tpu as pltpu

INPUT_DIM = 16
H1 = 128
H2 = 512
OUTPUT_DIM = 1024

_INV_SQRT2 = 0.7071067811865475  # 1/sqrt(2)


def _gelu_exact(x):
    # PyTorch nn.GELU() default is the exact (erf-based) GELU; keep it in f32.
    return 0.5 * x * (1.0 + jax.lax.erf(x * _INV_SQRT2))


def decoder_kernel(z_ref, w1_ref, b1_ref, w2_ref, b2_ref, w3_ref, b3_ref, o_ref):
    # z / w* tiles are bf16; all accumulation and elementwise math is f32.
    z = z_ref[...]                                                     # (bm, 16) bf16
    h = jnp.dot(z, w1_ref[...], preferred_element_type=jnp.float32)    # (bm, 128) f32
    h = _gelu_exact(h + b1_ref[...])
    h = jnp.dot(h.astype(jnp.bfloat16), w2_ref[...],
                preferred_element_type=jnp.float32)                    # (bm, 512) f32
    h = _gelu_exact(h + b2_ref[...])
    h = jnp.dot(h.astype(jnp.bfloat16), w3_ref[...],
                preferred_element_type=jnp.float32)                    # (bm, 1024) f32
    x = h + b3_ref[...]
    # sigmoid(x) = 1/(1+exp(-x)); exp and approx-reciprocal both execute on the
    # EUP slot, keeping the VALU free for the erf polynomial above.
    o_ref[...] = pl.reciprocal(1.0 + jnp.exp(-x), approx=True).astype(o_ref.dtype)


def _round_up(n, m):
    return ((n + m - 1) // m) * m


def _choose_block_m(batch, requested):
    """Static (trace-time) batch-tile selection."""
    # Floor 16: bf16 z tile sublane dim matches (16,128) packed tiling.
    # Cap 2048: worst case (f32 out) stays well under the 48 MiB VMEM budget
    # while amortizing the ~0.35 us/step grid overhead.
    bm = _round_up(max(16, min(int(requested), 2048)), 16)
    bm = min(bm, _round_up(batch, 16))
    # Guarantee >= 4 grid steps for large batches (>= 2 per v7x TensorCore with
    # dimension_semantics=("parallel",)) so each core can pipeline output
    # writeback / input prefetch against compute.
    if batch >= 512 and pl.cdiv(batch, bm) < 4:
        bm = max(128, _round_up(pl.cdiv(batch, 4), 16))
    return bm


@functools.partial(jax.jit, static_argnames=("block_m", "out_dtype"))
def decoder_forward(z, params, *, block_m=2048, out_dtype=jnp.bfloat16):
    """z: any shape whose trailing elements flatten to (-1, INPUT_DIM).

    out_dtype=jnp.bfloat16 (default) halves the dominant HBM writeback; pass
    jnp.float32 for closer PyTorch parity.
    """
    w1, b1, w2, b2, w3, b3 = params
    out_dt = jnp.dtype(out_dtype)
    z2 = z.reshape((-1, INPUT_DIM))
    B = z2.shape[0]

    bm = _choose_block_m(B, block_m)
    pad = (-B) % bm
    Bp = B + pad
    grid = (Bp // bm,)

    # bf16 matmul operands (no-op casts if params are already bf16); biases f32.
    z_bf = z2.astype(jnp.bfloat16)
    if pad:
        z_bf = jnp.pad(z_bf, ((0, pad), (0, 0)))
    w1b, w2b, w3b = (w.astype(jnp.bfloat16) for w in (w1, w2, w3))
    b1f, b2f, b3f = (b.astype(jnp.float32) for b in (b1, b2, b3))

    weight_bytes = 2 * (INPUT_DIM * H1 + H1 * H2 + H2 * OUTPUT_DIM)   # bf16
    bias_bytes = 4 * (H1 + H2 + OUTPUT_DIM)                           # f32
    # VMEM budget: double-buffered z/out streams, (double-buffered) resident
    # weights, f32 intermediates; 1.5x headroom + 8 MiB slack; hard cap 48 MiB
    # so we never request all of v7x's 64 MiB physical VMEM.
    act_bytes = bm * (2 * 2 * INPUT_DIM                   # z tile, bf16, 2 buffers
                      + 2 * out_dt.itemsize * OUTPUT_DIM  # out tile, 2 buffers
                      + 4 * (H1 + H2 + OUTPUT_DIM))       # f32 intermediates
    vmem_limit = int(1.5 * (act_bytes + 2 * (weight_bytes + bias_bytes))) + (8 << 20)
    vmem_limit = max(32 << 20, min(vmem_limit, 48 << 20))

    cost = pl.CostEstimate(
        flops=2 * Bp * (INPUT_DIM * H1 + H1 * H2 + H2 * OUTPUT_DIM),
        transcendentals=Bp * (H1 + H2 + OUTPUT_DIM),
        bytes_accessed=(Bp * (2 * INPUT_DIM + out_dt.itemsize * OUTPUT_DIM)
                        + weight_bytes + bias_bytes),
    )

    full = lambda shape: pl.BlockSpec(shape, lambda i: (0, 0))

    out = pl.pallas_call(
        decoder_kernel,
        out_shape=jax.ShapeDtypeStruct((Bp, OUTPUT_DIM), out_dt),
        grid_spec=pltpu.PrefetchScalarGridSpec(
            num_scalar_prefetch=0,
            grid=grid,
            in_specs=[
                pl.BlockSpec((bm, INPUT_DIM), lambda i: (i, 0)),  # z tile (bf16)
                full((INPUT_DIM, H1)),    # w1 (bf16, resident: constant index)
                full((1, H1)),            # b1 (f32)
                full((H1, H2)),           # w2
                full((1, H2)),            # b2
                full((H2, OUTPUT_DIM)),   # w3
                full((1, OUTPUT_DIM)),    # b3
            ],
            out_specs=pl.BlockSpec((bm, OUTPUT_DIM), lambda i: (i, 0)),
        ),
        compiler_params=pltpu.CompilerParams(
            dimension_semantics=("parallel",),
            vmem_limit_bytes=vmem_limit,
        ),
        cost_estimate=cost,
    )(z_bf, w1b, b1f, w2b, b2f, w3b, b3f)

    return out[:B]


def init_params(key):
    """nn.Linear-shaped params, stored transposed (in, out).

    Weights are pre-cast to bf16 once here (MXU-native) so decoder_forward
    does not pay a per-call HBM convert; biases stay f32.
    """
    ks = jax.random.split(key, 6)

    def linear(kw, kb, fan_in, fan_out):
        bound = 1.0 / jnp.sqrt(fan_in)
        w = jax.random.uniform(kw, (fan_in, fan_out), jnp.float32, -bound, bound)
        b = jax.random.uniform(kb, (1, fan_out), jnp.float32, -bound, bound)
        return w.astype(jnp.bfloat16), b

    w1, b1 = linear(ks[0], ks[1], INPUT_DIM, H1)
    w2, b2 = linear(ks[2], ks[3], H1, H2)
    w3, b3 = linear(ks[4], ks[5], H2, OUTPUT_DIM)
    return (w1, b1, w2, b2, w3, b3)


def decoder_reference(z, params):
    """Pure-JAX f32 reference for correctness check."""
    w1, b1, w2, b2, w3, b3 = params
    f32 = lambda a: a.astype(jnp.float32)
    z2 = z.reshape((-1, INPUT_DIM)).astype(jnp.float32)
    h = _gelu_exact(z2 @ f32(w1) + f32(b1))
    h = _gelu_exact(h @ f32(w2) + f32(b2))
    return jax.nn.sigmoid(h @ f32(w3) + f32(b3))


if __name__ == "__main__":
    key = jax.random.PRNGKey(0)
    k_param, k_z, k_z2 = jax.random.split(key, 3)

    params = init_params(k_param)

    # Small input consistent with forward(): z.reshape((-1, 16)) -> (8, 16).
    # Default bf16-output fast path.
    z = jax.random.normal(k_z, (2, 4, INPUT_DIM), dtype=jnp.float32)
    out = jax.block_until_ready(decoder_forward(z, params))
    ref = decoder_reference(z, params)
    assert out.shape == (8, OUTPUT_DIM), out.shape
    err = float(jnp.max(jnp.abs(out.astype(jnp.float32) - ref)))
    assert err < 2e-2, err  # bf16 matmuls + bf16 output vs f32 reference

    # Batch padding + multi-step "parallel" grid + f32-output parity path.
    z_big = jax.random.normal(k_z2, (44, INPUT_DIM), dtype=jnp.float32)
    out_big = jax.block_until_ready(
        decoder_forward(z_big, params, block_m=16, out_dtype=jnp.float32))
    ref_big = decoder_reference(z_big, params)
    assert out_big.shape == (44, OUTPUT_DIM), out_big.shape
    err_big = float(jnp.max(jnp.abs(out_big - ref_big)))
    assert err_big < 2e-2, err_big

    print("KERNEL_OK")
</pallas_src>

<mosaic_0001>
module attributes {stable_mosaic.version = 11 : i64} {
  func.func @decoder_kernel(%arg0: i32, %arg1: memref<16x16xbf16, #tpu.memory_space<vmem>>, %arg2: memref<16x128xbf16, #tpu.memory_space<vmem>>, %arg3: memref<1x128xf32, #tpu.memory_space<vmem>>, %arg4: memref<128x512xbf16, #tpu.memory_space<vmem>>, %arg5: memref<1x512xf32, #tpu.memory_space<vmem>>, %arg6: memref<512x1024xbf16, #tpu.memory_space<vmem>>, %arg7: memref<1x1024xf32, #tpu.memory_space<vmem>>, %arg8: memref<16x1024xbf16, #tpu.memory_space<vmem>>) attributes {dimension_semantics = [#tpu.dimension_semantics<parallel>], iteration_bounds = array<i64: 1>, scalar_prefetch = 0 : i64, scratch_operands = 0 : i64, tpu.core_type = #tpu.core_type<tc>, window_params = [{transform_indices = @transform_0, window_bounds = array<i64: 16, 16>}, {pipeline_mode = #tpu.pipeline_mode<synchronous>, transform_indices = @transform_1, window_bounds = array<i64: 16, 128>}, {pipeline_mode = #tpu.pipeline_mode<synchronous>, transform_indices = @transform_2, window_bounds = array<i64: 1, 128>}, {pipeline_mode = #tpu.pipeline_mode<synchronous>, transform_indices = @transform_3, window_bounds = array<i64: 128, 512>}, {pipeline_mode = #tpu.pipeline_mode<synchronous>, transform_indices = @transform_4, window_bounds = array<i64: 1, 512>}, {pipeline_mode = #tpu.pipeline_mode<synchronous>, transform_indices = @transform_5, window_bounds = array<i64: 512, 1024>}, {pipeline_mode = #tpu.pipeline_mode<synchronous>, transform_indices = @transform_6, window_bounds = array<i64: 1, 1024>}, {transform_indices = @transform_7, window_bounds = array<i64: 16, 1024>}]} {
    %c0 = arith.constant 0 : index
    %c0_0 = arith.constant 0 : index
    %0 = vector.load %arg1[%c0, %c0_0] : memref<16x16xbf16, #tpu.memory_space<vmem>>, vector<16x16xbf16>
    %c0_1 = arith.constant 0 : index
    %c0_2 = arith.constant 0 : index
    %1 = vector.load %arg2[%c0_1, %c0_2] : memref<16x128xbf16, #tpu.memory_space<vmem>>, vector<16x128xbf16>
    %cst = arith.constant dense<0.000000e+00> : vector<16x128xf32>
    %2 = tpu.matmul %0, %1, %cst {dimension_numbers = #tpu.dot_dimension_numbers<[1], [0], [0], [1], [0, 0, 1, 1], [], []>} : vector<16x16xbf16>, vector<16x128xbf16>, vector<16x128xf32> -> vector<16x128xf32>
    %c0_3 = arith.constant 0 : index
    %c0_4 = arith.constant 0 : index
    %3 = vector.load %arg3[%c0_3, %c0_4] : memref<1x128xf32, #tpu.memory_space<vmem>>, vector<1x128xf32>
    %4 = vector.broadcast %3 : vector<1x128xf32> to vector<16x128xf32>
    %5 = arith.addf %2, %4 : vector<16x128xf32>
    %cst_5 = arith.constant 5.000000e-01 : f32
    %6 = vector.broadcast %cst_5 : f32 to vector<16x128xf32>
    %7 = arith.mulf %6, %5 : vector<16x128xf32>
    %cst_6 = arith.constant 0.707106769 : f32
    %8 = vector.broadcast %cst_6 : f32 to vector<16x128xf32>
    %9 = arith.mulf %5, %8 : vector<16x128xf32>
    %10 = math.erf %9 : vector<16x128xf32>
    %cst_7 = arith.constant 1.000000e+00 : f32
    %11 = vector.broadcast %cst_7 : f32 to vector<16x128xf32>
    %12 = arith.addf %11, %10 : vector<16x128xf32>
    %13 = arith.mulf %7, %12 : vector<16x128xf32>
    %14 = arith.truncf %13 : vector<16x128xf32> to vector<16x128xbf16>
    %c0_8 = arith.constant 0 : index
    %c0_9 = arith.constant 0 : index
    %15 = vector.load %arg4[%c0_8, %c0_9] : memref<128x512xbf16, #tpu.memory_space<vmem>>, vector<128x512xbf16>
    %cst_10 = arith.constant dense<0.000000e+00> : vector<16x512xf32>
    %16 = tpu.matmul %14, %15, %cst_10 {dimension_numbers = #tpu.dot_dimension_numbers<[1], [0], [0], [1], [0, 0, 1, 1], [], []>} : vector<16x128xbf16>, vector<128x512xbf16>, vector<16x512xf32> -> vector<16x512xf32>
    %c0_11 = arith.constant 0 : index
    %c0_12 = arith.constant 0 : index
    %17 = vector.load %arg5[%c0_11, %c0_12] : memref<1x512xf32, #tpu.memory_space<vmem>>, vector<1x512xf32>
    %18 = vector.broadcast %17 : vector<1x512xf32> to vector<16x512xf32>
    %19 = arith.addf %16, %18 : vector<16x512xf32>
    %cst_13 = arith.constant 5.000000e-01 : f32
    %20 = vector.broadcast %cst_13 : f32 to vector<16x512xf32>
    %21 = arith.mulf %20, %19 : vector<16x512xf32>
    %cst_14 = arith.constant 0.707106769 : f32
    %22 = vector.broadcast %cst_14 : f32 to vector<16x512xf32>
    %23 = arith.mulf %19, %22 : vector<16x512xf32>
    %24 = math.erf %23 : vector<16x512xf32>
    %cst_15 = arith.constant 1.000000e+00 : f32
    %25 = vector.broadcast %cst_15 : f32 to vector<16x512xf32>
    %26 = arith.addf %25, %24 : vector<16x512xf32>
    %27 = arith.mulf %21, %26 : vector<16x512xf32>
    %28 = arith.truncf %27 : vector<16x512xf32> to vector<16x512xbf16>
    %c0_16 = arith.constant 0 : index
    %c0_17 = arith.constant 0 : index
    %29 = vector.load %arg6[%c0_16, %c0_17] : memref<512x1024xbf16, #tpu.memory_space<vmem>>, vector<512x1024xbf16>
    %cst_18 = arith.constant dense<0.000000e+00> : vector<16x1024xf32>
    %30 = tpu.matmul %28, %29, %cst_18 {dimension_numbers = #tpu.dot_dimension_numbers<[1], [0], [0], [1], [0, 0, 1, 1], [], []>} : vector<16x512xbf16>, vector<512x1024xbf16>, vector<16x1024xf32> -> vector<16x1024xf32>
    %c0_19 = arith.constant 0 : index
    %c0_20 = arith.constant 0 : index
    %31 = vector.load %arg7[%c0_19, %c0_20] : memref<1x1024xf32, #tpu.memory_space<vmem>>, vector<1x1024xf32>
    %32 = vector.broadcast %31 : vector<1x1024xf32> to vector<16x1024xf32>
    %33 = arith.addf %30, %32 : vector<16x1024xf32>
    %cst_21 = arith.constant 0.000000e+00 : f32
    %34 = vector.broadcast %cst_21 : f32 to vector<16x1024xf32>
    %35 = arith.subf %34, %33 : vector<16x1024xf32>
    %36 = math.exp %35 : vector<16x1024xf32>
    %cst_22 = arith.constant 1.000000e+00 : f32
    %37 = vector.broadcast %cst_22 : f32 to vector<16x1024xf32>
    %38 = arith.addf %37, %36 : vector<16x1024xf32>
    %39 = tpu.reciprocal %38 {approx = true} : vector<16x1024xf32> -> vector<16x1024xf32>
    %40 = arith.truncf %39 : vector<16x1024xf32> to vector<16x1024xbf16>
    %c0_23 = arith.constant 0 : index
    %c0_24 = arith.constant 0 : index
    %41 = vector.load %arg8[%c0_23, %c0_24] : memref<16x1024xbf16, #tpu.memory_space<vmem>>, vector<16x1024xbf16>
    tpu.vector_store %arg8[%c0_23, %c0_24], %40 {strides = array<i32>} : memref<16x1024xbf16, #tpu.memory_space<vmem>>, vector<16x1024xbf16>,
    return
  }
  func.func @transform_0(%arg0: i32) -> (i32, i32) {
    %c0_i32 = arith.constant 0 : i32
    %c0_i32_0 = arith.constant 0 : i32
    return %arg0, %c0_i32 : i32, i32
  }
  func.func @transform_1(%arg0: i32) -> (i32, i32) {
    %c0_i32 = arith.constant 0 : i32
    %c0_i32_0 = arith.constant 0 : i32
    %c0_i32_1 = arith.constant 0 : i32
    return %c0_i32, %c0_i32_0 : i32, i32
  }
  func.func @transform_2(%arg0: i32) -> (i32, i32) {
    %c0_i32 = arith.constant 0 : i32
    %c0_i32_0 = arith.constant 0 : i32
    %c0_i32_1 = arith.constant 0 : i32
    return %c0_i32, %c0_i32_0 : i32, i32
  }
  func.func @transform_3(%arg0: i32) -> (i32, i32) {
    %c0_i32 = arith.constant 0 : i32
    %c0_i32_0 = arith.constant 0 : i32
    %c0_i32_1 = arith.constant 0 : i32
    return %c0_i32, %c0_i32_0 : i32, i32
  }
  func.func @transform_4(%arg0: i32) -> (i32, i32) {
    %c0_i32 = arith.constant 0 : i32
    %c0_i32_0 = arith.constant 0 : i32
    %c0_i32_1 = arith.constant 0 : i32
    return %c0_i32, %c0_i32_0 : i32, i32
  }
  func.func @transform_5(%arg0: i32) -> (i32, i32) {
    %c0_i32 = arith.constant 0 : i32
    %c0_i32_0 = arith.constant 0 : i32
    %c0_i32_1 = arith.constant 0 : i32
    return %c0_i32, %c0_i32_0 : i32, i32
  }
  func.func @transform_6(%arg0: i32) -> (i32, i32) {
    %c0_i32 = arith.constant 0 : i32
    %c0_i32_0 = arith.constant 0 : i32
    %c0_i32_1 = arith.constant 0 : i32
    return %c0_i32, %c0_i32_0 : i32, i32
  }
  func.func @transform_7(%arg0: i32) -> (i32, i32) {
    %c0_i32 = arith.constant 0 : i32
    %c0_i32_0 = arith.constant 0 : i32
    return %arg0, %c0_i32 : i32, i32
  }
}

</mosaic_0001>

<llo_original>
// kernel: decoder_forward.1
$region0: #{decoder_forward.1}
  #allocation0 [shape = 'u32[]', space=smem, size = 0x4, offset = 0x4, fixed_abs, tag = 'smem constant byte address 0x4 - core index']
  #allocation1 [shape = 'u32[144,128]{1,0:T(1,128)}', space=vmem, size = 0x12000, scoped, tag = 'internal scratch']
  %s0 = inlined_call_operand.vmem [shape: bf16[16,16], index: 0, kind: input, shape index: {}]
  %s1 = inlined_call_operand.vmem [shape: bf16[16,128], index: 1, kind: input, shape index: {}]
  %s2 = inlined_call_operand.vmem [shape: f32[1,128], index: 2, kind: input, shape index: {}]
  %s3 = inlined_call_operand.hbm [shape: bf16[128,512], index: 3, kind: input, shape index: {}]
  %s4 = inlined_call_operand.vmem [shape: f32[1,512], index: 4, kind: input, shape index: {}]
  %s5 = inlined_call_operand.hbm [shape: bf16[512,1024], index: 5, kind: input, shape index: {}]
  %s6 = inlined_call_operand.vmem [shape: f32[1,1024], index: 6, kind: input, shape index: {}]
  %s7 = inlined_call_operand.vmem [shape: bf16[16,1024], index: 7, kind: output, shape index: {}]
  %s8 = sld [smem:[#allocation0]]
  $region46: #{decoder_forward.1} parent=0
    _
  %s10 = ssub.s32 1, %s8
  %s11 = scalar_select 0, %s10, %s8
  $region1: #{decoder_forward.1} parent=0
    #allocation2 [shape = 'u8[131072]{0}', space=vmem, size = 0x20000, scoped, tag = 'input window, operand 3, single buffered']
    #allocation3 [shape = 's32[1]{0}', space=sflag, size = 0x4, scoped, tag = 'scoped memory for decoder_forward.1']
    #allocation4 [shape = 'u8[1048576]{0}', space=vmem, size = 0x100000, scoped, tag = 'input window, operand 5, single buffered']
    #allocation5 [shape = 's32[1]{0}', space=sflag, size = 0x4, scoped, tag = 'scoped memory for decoder_forward.1']
    %12 = vsyncpa [#allocation3], 0
    %13 = vsyncpa [#allocation5], 0
    // Predicated region
    $region2: #{decoder_forward.1} parent=1 // pred_check
      _
    $region3: #{decoder_forward.1} parent=1 // pred_check_branch
      %15 = sbr.rel (0) target = $region5
    $region4: #{decoder_forward.1} parent=1 // pred_region
      _
    $region5: #{decoder_forward.1} parent=1 // pred_fallthru
      _
    // Predicated region
    $region6: #{decoder_forward.1} parent=1 // pred_check
      _
    $region7: #{decoder_forward.1} parent=1 // pred_check_branch
      %17 = sbr.rel (0) target = $region9
    $region8: #{decoder_forward.1} parent=1 // pred_region
      _
    $region9: #{decoder_forward.1} parent=1 // pred_fallthru
      _
    // Predicated region
    $region10: #{decoder_forward.1} parent=1 // pred_check
      _
    $region11: #{decoder_forward.1} parent=1 // pred_check_branch
      %19 = sbr.rel (0) target = $region13
    $region12: #{decoder_forward.1} parent=1 // pred_region
      _
    $region13: #{decoder_forward.1} parent=1 // pred_fallthru
      _
    // Predicated region
    $region14: #{decoder_forward.1} parent=1 // pred_check
      _
    $region15: #{decoder_forward.1} parent=1 // pred_check_branch
      %21 = sbr.rel (0) target = $region17
    $region16: #{decoder_forward.1} parent=1 // pred_region
      %s23 = ssub.s32 4096, 4096
      %24 = vsyncadd [#allocation3], %s23
      %s25 = sshll.u32 [#allocation2], 4
      %s26 = int_to_ptr.vmem [resolvable:$true] %s25
      %31 = dma.hbm_to_vmem [thread:$0]  %s3, 4096, %s26, [#allocation3], 256, 256, 16
    $region17: #{decoder_forward.1} parent=1 // pred_fallthru
      _
    // Predicated region
    $region18: #{decoder_forward.1} parent=1 // pred_check
      _
    $region19: #{decoder_forward.1} parent=1 // pred_check_branch
      %33 = sbr.rel (0) target = $region21
    $region20: #{decoder_forward.1} parent=1 // pred_region
      _
    $region21: #{decoder_forward.1} parent=1 // pred_fallthru
      _
    // Predicated region
    $region22: #{decoder_forward.1} parent=1 // pred_check
      _
    $region23: #{decoder_forward.1} parent=1 // pred_check_branch
      %35 = sbr.rel (0) target = $region25
    $region24: #{decoder_forward.1} parent=1 // pred_region
      %s37 = ssub.s32 32768, 32768
      %38 = vsyncadd [#allocation5], %s37
      %s39 = sshll.u32 [#allocation4], 4
      %s40 = int_to_ptr.vmem [resolvable:$true] %s39
      %45 = dma.hbm_to_vmem [thread:$0]  %s5, 32768, %s40, [#allocation5], 512, 512, 32
    $region25: #{decoder_forward.1} parent=1 // pred_fallthru
      _
    // Predicated region
    $region26: #{decoder_forward.1} parent=1 // pred_check
      _
    $region27: #{decoder_forward.1} parent=1 // pred_check_branch
      %47 = sbr.rel (0) target = $region29
    $region28: #{decoder_forward.1} parent=1 // pred_region
      _
    $region29: #{decoder_forward.1} parent=1 // pred_fallthru
      _
    // Predicated region
    $region30: #{decoder_forward.1} parent=1 // pred_check
      _
    $region31: #{decoder_forward.1} parent=1 // pred_check_branch
      %49 = sbr.rel (0) target = $region33
    $region32: #{decoder_forward.1} parent=1 // pred_region
      %50 = dma.done [#allocation3], 4096
    $region33: #{decoder_forward.1} parent=1 // pred_fallthru
      _
    // Predicated region
    $region34: #{decoder_forward.1} parent=1 // pred_check
      _
    $region35: #{decoder_forward.1} parent=1 // pred_check_branch
      %52 = sbr.rel (0) target = $region37
    $region36: #{decoder_forward.1} parent=1 // pred_region
      %53 = dma.done [#allocation5], 32768
    $region37: #{decoder_forward.1} parent=1 // pred_fallthru
      _
    %v55 = vld [vmem:[%s0] sm:$0xf]
    %v56 = vld [vmem:[%s0 + $0x4] sm:$0xf]
    %v57 = vld [vmem:[%s1] sm:$0xf]
    %v58 = vld [vmem:[%s1 + $0x4] sm:$0xf]
    %v59 = vld [vmem:[%s2] sm:$0x1]
    %v61 = vlaneseq
    %v62 = vshrl.u32 %v61, 7
    %v63 = vsub.s32 0, %v62
    %v64 = vrot.slane %v59, %v63
    %v68 = vunpack.c.l.b16 %v55
    %v69 = vunpack.c.l.b16 %v56
    %v70 = vpack.c.b16 %v69, %v68
    %v73 = vunpack.c.l.b16 %v57
    %v74 = vunpack.c.l.b16 %v58
    %v75 = vpack.c.b16 %v74, %v73
    %vm77 = vcmask 130048
    %v79 = vsel %vm77, %v70, 0
    %81 = vmatprep.subr.bf16.mxu0 0
    %82 = vmatpush1.bf16.msra.mxu0 %v75
    %83 = vmatprep.subr.bf16.mxu0 0
    %84 = vmatpush1.bf16.msra.mxu0 0
    %85 = vmatprep.subr.bf16.mxu0 0
    %86 = vmatpush1.bf16.msra.mxu0 0
    %87 = vmatprep.subr.bf16.mxu0 0
    %88 = vmatpush1.bf16.msra.mxu0 0
    %89 = vmatprep.subr.bf16.mxu0 0
    %90 = vmatpush1.bf16.msra.mxu0 0
    %91 = vmatprep.subr.bf16.mxu0 0
    %92 = vmatpush1.bf16.msra.mxu0 0
    %93 = vmatprep.subr.bf16.mxu0 0
    %94 = vmatpush1.bf16.msra.mxu0 0
    %95 = vmatprep.subr.bf16.mxu0 0
    %96 = vmatpush1.bf16.msra.mxu0 0
    %97 = vmatprep.subr.bf16.mxu0 0
    %98 = vmatpush1.bf16.msra.mxu0 0
    %99 = vmatprep.subr.bf16.mxu0 0
    %100 = vmatpush1.bf16.msra.mxu0 0
    %101 = vmatprep.subr.bf16.mxu0 0
    %102 = vmatpush1.bf16.msra.mxu0 0
    %103 = vmatprep.subr.bf16.mxu0 0
    %104 = vmatpush1.bf16.msra.mxu0 0
    %105 = vmatprep.subr.bf16.mxu0 0
    %106 = vmatpush1.bf16.msra.mxu0 0
    %107 = vmatprep.subr.bf16.mxu0 0
    %108 = vmatpush1.bf16.msra.mxu0 0
    %109 = vmatprep.subr.bf16.mxu0 0
    %110 = vmatpush1.bf16.msra.mxu0 0
    %111 = vmatprep.subr.bf16.mxu0 0
    %112 = vmatpush1.bf16.msra.mxu0 0
    %113 = vmatprep.mubr.bf16.mxu0 0
    %114 = vmatmul.mubr.bf16.gmra.mrb[0].mxu0 %v79
    %v115 = vpop.f32.mrb[0].mxu0
    %v116 = vadd.f32 %v64, %v115
    %v117 = vpop.f32.mrb[0].mxu0
    %v118 = vpop.f32.mrb[0].mxu0
    %v119 = vadd.f32 %v64, %v118
    %v120 = vpop.f32.mrb[0].mxu0
    %121 = vdwg.mxu0
    %v122 = vmul.f32 %v116, 0.5
    %v123 = vmul.f32 %v119, 0.5
    %v124 = vmul.f32 %v116, 0.70710677
    %v125 = vmul.f32 %v119, 0.70710677
    %v126 = verf.f32.pop %v124
    %v127 = verf.f32.pop %v125
    %v128 = vadd.f32 %v126, 1.0
    %v129 = vadd.f32 %v127, 1.0
    %v130 = vmul.f32 %v122, %v128
    %v131 = vmul.f32 %v123, %v129
    %v132 = vpack.c.bf16 %v131, %v130
    %v133 = vld [vmem:[#allocation2] sm:$0xff]
    %v134 = vld [vmem:[#allocation2 + $0x8] sm:$0xff]
    %v135 = vld [vmem:[#allocation2 + $0x10] sm:$0xff]
    %v136 = vld [vmem:[#allocation2 + $0x18] sm:$0xff]
    %v137 = vld [vmem:[#allocation2 + $0x20] sm:$0xff]
    %v138 = vld [vmem:[#allocation2 + $0x28] sm:$0xff]
    %v139 = vld [vmem:[#allocation2 + $0x30] sm:$0xff]
    %v140 = vld [vmem:[#allocation2 + $0x38] sm:$0xff]
    %v141 = vld [vmem:[#allocation2 + $0x40] sm:$0xff]
    %v142 = vld [vmem:[#allocation2 + $0x48] sm:$0xff]
    %v143 = vld [vmem:[#allocation2 + $0x50] sm:$0xff]
    %v144 = vld [vmem:[#allocation2 + $0x58] sm:$0xff]
    %v145 = vld [vmem:[#allocation2 + $0x60] sm:$0xff]
    %v146 = vld [vmem:[#allocation2 + $0x68] sm:$0xff]
    %v147 = vld [vmem:[#allocation2 + $0x70] sm:$0xff]
    %v148 = vld [vmem:[#allocation2 + $0x78] sm:$0xff]
    %v149 = vld [vmem:[#allocation2 + $0x80] sm:$0xff]
    %v150 = vld [vmem:[#allocation2 + $0x88] sm:$0xff]
    %v151 = vld [vmem:[#allocation2 + $0x90] sm:$0xff]
    %v152 = vld [vmem:[#allocation2 + $0x98] sm:$0xff]
    %v153 = vld [vmem:[#allocation2 + $0xa0] sm:$0xff]
    %v154 = vld [vmem:[#allocation2 + $0xa8] sm:$0xff]
    %v155 = vld [vmem:[#allocation2 + $0xb0] sm:$0xff]
    %v156 = vld [vmem:[#allocation2 + $0xb8] sm:$0xff]
    %v157 = vld [vmem:[#allocation2 + $0xc0] sm:$0xff]
    %v158 = vld [vmem:[#allocation2 + $0xc8] sm:$0xff]
    %v159 = vld [vmem:[#allocation2 + $0xd0] sm:$0xff]
    %v160 = vld [vmem:[#allocation2 + $0xd8] sm:$0xff]
    %v161 = vld [vmem:[#allocation2 + $0xe0] sm:$0xff]
    %v162 = vld [vmem:[#allocation2 + $0xe8] sm:$0xff]
    %v163 = vld [vmem:[#allocation2 + $0xf0] sm:$0xff]
    %v164 = vld [vmem:[#allocation2 + $0xf8] sm:$0xff]
    %v165 = vld [vmem:[%s4] sm:$0xf]
    %v167 = vlaneseq
    %v168 = vshrl.u32 %v167, 7
    %v169 = vsub.s32 0, %v168
    %v170 = vrot.slane %v165, %v169
    %v171 = vlaneseq
    %v172 = vshrl.u32 %v171, 7
    %v173 = vsub.s32 1, %v172
    %v174 = vrot.slane %v165, %v173
    %v175 = vlaneseq
    %v176 = vshrl.u32 %v175, 7
    %v177 = vsub.s32 2, %v176
    %v178 = vrot.slane %v165, %v177
    %v179 = vlaneseq
    %v180 = vshrl.u32 %v179, 7
    %v181 = vsub.s32 3, %v180
    %v182 = vrot.slane %v165, %v181
    %v219 = vunpack.c.l.b16 %v133
    %v220 = vunpack.c.h.b16 %v133
    %v221 = vunpack.c.l.b16 %v134
    %v222 = vunpack.c.h.b16 %v134
    %v223 = vunpack.c.l.b16 %v135
    %v224 = vunpack.c.h.b16 %v135
    %v225 = vunpack.c.l.b16 %v136
    %v226 = vunpack.c.h.b16 %v136
    %v227 = vunpack.c.l.b16 %v137
    %v228 = vunpack.c.h.b16 %v137
    %v229 = vunpack.c.l.b16 %v138
    %v230 = vunpack.c.h.b16 %v138
    %v231 = vunpack.c.l.b16 %v139
    %v232 = vunpack.c.h.b16 %v139
    %v233 = vunpack.c.l.b16 %v140
    %v234 = vunpack.c.h.b16 %v140
    %v235 = vunpack.c.l.b16 %v141
    %v236 = vunpack.c.h.b16 %v141
    %v237 = vunpack.c.l.b16 %v142
    %v238 = vunpack.c.h.b16 %v142
    %v239 = vunpack.c.l.b16 %v143
    %v240 = vunpack.c.h.b16 %v143
    %v241 = vunpack.c.l.b16 %v144
    %v242 = vunpack.c.h.b16 %v144
    %v243 = vunpack.c.l.b16 %v145
    %v244 = vunpack.c.h.b16 %v145
    %v245 = vunpack.c.l.b16 %v146
    %v246 = vunpack.c.h.b16 %v146
    %v247 = vunpack.c.l.b16 %v147
    %v248 = vunpack.c.h.b16 %v147
    %v249 = vunpack.c.l.b16 %v148
    %v250 = vunpack.c.h.b16 %v148
    %v251 = vunpack.c.l.b16 %v149
    %v252 = vunpack.c.h.b16 %v149
    %v253 = vunpack.c.l.b16 %v150
    %v254 = vunpack.c.h.b16 %v150
    %v255 = vunpack.c.l.b16 %v151
    %v256 = vunpack.c.h.b16 %v151
    %v257 = vunpack.c.l.b16 %v152
    %v258 = vunpack.c.h.b16 %v152
    %v259 = vunpack.c.l.b16 %v153
    %v260 = vunpack.c.h.b16 %v153
    %v261 = vunpack.c.l.b16 %v154
    %v262 = vunpack.c.h.b16 %v154
    %v263 = vunpack.c.l.b16 %v155
    %v264 = vunpack.c.h.b16 %v155
    %v265 = vunpack.c.l.b16 %v156
    %v266 = vunpack.c.h.b16 %v156
    %v267 = vunpack.c.l.b16 %v157
    %v268 = vunpack.c.h.b16 %v157
    %v269 = vunpack.c.l.b16 %v158
    %v270 = vunpack.c.h.b16 %v158
    %v271 = vunpack.c.l.b16 %v159
    %v272 = vunpack.c.h.b16 %v159
    %v273 = vunpack.c.l.b16 %v160
    %v274 = vunpack.c.h.b16 %v160
    %v275 = vunpack.c.l.b16 %v161
    %v276 = vunpack.c.h.b16 %v161
    %v277 = vunpack.c.l.b16 %v162
    %v278 = vunpack.c.h.b16 %v162
    %v279 = vunpack.c.l.b16 %v163
    %v280 = vunpack.c.h.b16 %v163
    %v281 = vunpack.c.l.b16 %v164
    %v282 = vunpack.c.h.b16 %v164
    %v283 = vpack.c.b16 %v223, %v219
    %v284 = vpack.c.b16 %v224, %v220
    %v285 = vpack.c.b16 %v225, %v221
    %v286 = vpack.c.b16 %v226, %v222
    %v287 = vpack.c.b16 %v231, %v227
    %v288 = vpack.c.b16 %v232, %v228
    %v289 = vpack.c.b16 %v233, %v229
    %v290 = vpack.c.b16 %v234, %v230
    %v291 = vpack.c.b16 %v239, %v235
    %v292 = vpack.c.b16 %v240, %v236
    %v293 = vpack.c.b16 %v241, %v237
    %v294 = vpack.c.b16 %v242, %v238
    %v295 = vpack.c.b16 %v247, %v243
    %v296 = vpack.c.b16 %v248, %v244
    %v297 = vpack.c.b16 %v249, %v245
    %v298 = vpack.c.b16 %v250, %v246
    %v299 = vpack.c.b16 %v255, %v251
    %v300 = vpack.c.b16 %v256, %v252
    %v301 = vpack.c.b16 %v257, %v253
    %v302 = vpack.c.b16 %v258, %v254
    %v303 = vpack.c.b16 %v263, %v259
    %v304 = vpack.c.b16 %v264, %v260
    %v305 = vpack.c.b16 %v265, %v261
    %v306 = vpack.c.b16 %v266, %v262
    %v307 = vpack.c.b16 %v271, %v267
    %v308 = vpack.c.b16 %v272, %v268
    %v309 = vpack.c.b16 %v273, %v269
    %v310 = vpack.c.b16 %v274, %v270
    %v311 = vpack.c.b16 %v279, %v275
    %v312 = vpack.c.b16 %v280, %v276
    %v313 = vpack.c.b16 %v281, %v277
    %v314 = vpack.c.b16 %v282, %v278
    %347 = vmatprep.subr.bf16.mxu0 %v284
    %348 = vmatpush1.bf16.msra.mxu0 %v283
    %349 = vmatprep.subr.bf16.mxu0 %v288
    %350 = vmatpush1.bf16.msra.mxu0 %v287
    %351 = vmatprep.subr.bf16.mxu0 %v292
    %352 = vmatpush1.bf16.msra.mxu0 %v291
    %353 = vmatprep.subr.bf16.mxu0 %v296
    %354 = vmatpush1.bf16.msra.mxu0 %v295
    %355 = vmatprep.subr.bf16.mxu0 %v300
    %356 = vmatpush1.bf16.msra.mxu0 %v299
    %357 = vmatprep.subr.bf16.mxu0 %v304
    %358 = vmatpush1.bf16.msra.mxu0 %v303
    %359 = vmatprep.subr.bf16.mxu0 %v308
    %360 = vmatpush1.bf16.msra.mxu0 %v307
    %361 = vmatprep.subr.bf16.mxu0 %v312
    %362 = vmatpush1.bf16.msra.mxu0 %v311
    %363 = vmatprep.subr.bf16.mxu0 0
    %364 = vmatpush1.bf16.msra.mxu0 0
    %365 = vmatprep.subr.bf16.mxu0 0
    %366 = vmatpush1.bf16.msra.mxu0 0
    %367 = vmatprep.subr.bf16.mxu0 0
    %368 = vmatpush1.bf16.msra.mxu0 0
    %369 = vmatprep.subr.bf16.mxu0 0
    %370 = vmatpush1.bf16.msra.mxu0 0
    %371 = vmatprep.subr.bf16.mxu0 0
    %372 = vmatpush1.bf16.msra.mxu0 0
    %373 = vmatprep.subr.bf16.mxu0 0
    %374 = vmatpush1.bf16.msra.mxu0 0
    %375 = vmatprep.subr.bf16.mxu0 0
    %376 = vmatpush1.bf16.msra.mxu0 0
    %377 = vmatprep.subr.bf16.mxu0 0
    %378 = vmatpush1.bf16.msra.mxu0 0
    %379 = vmatprep.mubr.bf16.mxu0 0
    %380 = vmatmul.mubr.bf16.gmra.mrb[0].mxu0 %v132
    %v381 = vpop.f32.mrb[0].mxu0
    %v382 = vadd.f32 %v170, %v381
    %v383 = vpop.f32.mrb[0].mxu0
    %v384 = vadd.f32 %v174, %v383
    %v385 = vpop.f32.mrb[0].mxu0
    %v386 = vadd.f32 %v170, %v385
    %v387 = vpop.f32.mrb[0].mxu0
    %v388 = vadd.f32 %v174, %v387
    %389 = vdwg.mxu0
    %390 = vmatprep.subr.bf16.mxu0 %v286
    %391 = vmatpush1.bf16.msra.mxu0 %v285
    %392 = vmatprep.subr.bf16.mxu0 %v290
    %393 = vmatpush1.bf16.msra.mxu0 %v289
    %394 = vmatprep.subr.bf16.mxu0 %v294
    %395 = vmatpush1.bf16.msra.mxu0 %v293
    %396 = vmatprep.subr.bf16.mxu0 %v298
    %397 = vmatpush1.bf16.msra.mxu0 %v297
    %398 = vmatprep.subr.bf16.mxu0 %v302
    %399 = vmatpush1.bf16.msra.mxu0 %v301
    %400 = vmatprep.subr.bf16.mxu0 %v306
    %401 = vmatpush1.bf16.msra.mxu0 %v305
    %402 = vmatprep.subr.bf16.mxu0 %v310
    %403 = vmatpush1.bf16.msra.mxu0 %v309
    %404 = vmatprep.subr.bf16.mxu0 %v314
    %405 = vmatpush1.bf16.msra.mxu0 %v313
    %406 = vmatprep.subr.bf16.mxu0 0
    %407 = vmatpush1.bf16.msra.mxu0 0
    %408 = vmatprep.subr.bf16.mxu0 0
    %409 = vmatpush1.bf16.msra.mxu0 0
    %410 = vmatprep.subr.bf16.mxu0 0
    %411 = vmatpush1.bf16.msra.mxu0 0
    %412 = vmatprep.subr.bf16.mxu0 0
    %413 = vmatpush1.bf16.msra.mxu0 0
    %414 = vmatprep.subr.bf16.mxu0 0
    %415 = vmatpush1.bf16.msra.mxu0 0
    %416 = vmatprep.subr.bf16.mxu0 0
    %417 = vmatpush1.bf16.msra.mxu0 0
    %418 = vmatprep.subr.bf16.mxu0 0
    %419 = vmatpush1.bf16.msra.mxu0 0
    %420 = vmatprep.subr.bf16.mxu0 0
    %421 = vmatpush1.bf16.msra.mxu0 0
    %422 = vmatprep.mubr.bf16.mxu0 0
    %423 = vmatmul.mubr.bf16.gmra.mrb[0].mxu0 %v132
    %v424 = vpop.f32.mrb[0].mxu0
    %v425 = vadd.f32 %v178, %v424
    %v426 = vpop.f32.mrb[0].mxu0
    %v427 = vadd.f32 %v182, %v426
    %v428 = vpop.f32.mrb[0].mxu0
    %v429 = vadd.f32 %v178, %v428
    %v430 = vpop.f32.mrb[0].mxu0
    %v431 = vadd.f32 %v182, %v430
    %432 = vdwg.mxu0
    %v433 = vmul.f32 %v382, 0.5
    %v434 = vmul.f32 %v384, 0.5
    %v435 = vmul.f32 %v425, 0.5
    %v436 = vmul.f32 %v427, 0.5
    %v437 = vmul.f32 %v386, 0.5
    %v438 = vmul.f32 %v388, 0.5
    %v439 = vmul.f32 %v429, 0.5
    %v440 = vmul.f32 %v431, 0.5
    %v441 = vmul.f32 %v382, 0.70710677
    %v442 = vmul.f32 %v384, 0.70710677
    %v443 = vmul.f32 %v425, 0.70710677
    %v444 = vmul.f32 %v427, 0.70710677
    %v445 = vmul.f32 %v386, 0.70710677
    %v446 = vmul.f32 %v388, 0.70710677
    %v447 = vmul.f32 %v429, 0.70710677
    %v448 = vmul.f32 %v431, 0.70710677
    %v449 = verf.f32.pop %v441
    %v450 = verf.f32.pop %v442
    %v451 = verf.f32.pop %v443
    %v452 = verf.f32.pop %v444
    %v453 = verf.f32.pop %v445
    %v454 = verf.f32.pop %v446
    %v455 = verf.f32.pop %v447
    %v456 = verf.f32.pop %v448
    %v457 = vadd.f32 %v449, 1.0
    %v458 = vadd.f32 %v450, 1.0
    %v459 = vadd.f32 %v451, 1.0
    %v460 = vadd.f32 %v452, 1.0
    %v461 = vadd.f32 %v453, 1.0
    %v462 = vadd.f32 %v454, 1.0
    %v463 = vadd.f32 %v455, 1.0
    %v464 = vadd.f32 %v456, 1.0
    %v465 = vmul.f32 %v433, %v457
    %v466 = vmul.f32 %v434, %v458
    %v467 = vmul.f32 %v435, %v459
    %v468 = vmul.f32 %v436, %v460
    %v469 = vmul.f32 %v437, %v461
    %v470 = vmul.f32 %v438, %v462
    %v471 = vmul.f32 %v439, %v463
    %v472 = vmul.f32 %v440, %v464
    %v473 = vpack.c.bf16 %v469, %v465
    %v474 = vpack.c.bf16 %v470, %v466
    %v475 = vpack.c.bf16 %v471, %v467
    %v476 = vpack.c.bf16 %v472, %v468
    %v477 = vld [vmem:[#allocation4] sm:$0xff]
    %v478 = vld [vmem:[#allocation4 + $0x8] sm:$0xff]
    %v479 = vld [vmem:[#allocation4 + $0x10] sm:$0xff]
    %v480 = vld [vmem:[#allocation4 + $0x18] sm:$0xff]
    %v481 = vld [vmem:[#allocation4 + $0x20] sm:$0xff]
    %v482 = vld [vmem:[#allocation4 + $0x28] sm:$0xff]
    %v483 = vld [vmem:[#allocation4 + $0x30] sm:$0xff]
    %v484 = vld [vmem:[#allocation4 + $0x38] sm:$0xff]
    %v485 = vld [vmem:[#allocation4 + $0x40] sm:$0xff]
    %v486 = vld [vmem:[#allocation4 + $0x48] sm:$0xff]
    %v487 = vld [vmem:[#allocation4 + $0x50] sm:$0xff]
    %v488 = vld [vmem:[#allocation4 + $0x58] sm:$0xff]
    %v489 = vld [vmem:[#allocation4 + $0x60] sm:$0xff]
    %v490 = vld [vmem:[#allocation4 + $0x68] sm:$0xff]
    %v491 = vld [vmem:[#allocation4 + $0x70] sm:$0xff]
    %v492 = vld [vmem:[#allocation4 + $0x78] sm:$0xff]
    %v493 = vld [vmem:[#allocation4 + $0x80] sm:$0xff]
    %v494 = vld [vmem:[#allocation4 + $0x88] sm:$0xff]
    %v495 = vld [vmem:[#allocation4 + $0x90] sm:$0xff]
    %v496 = vld [vmem:[#allocation4 + $0x98] sm:$0xff]
    %v497 = vld [vmem:[#allocation4 + $0xa0] sm:$0xff]
    %v498 = vld [vmem:[#allocation4 + $0xa8] sm:$0xff]
    %v499 = vld [vmem:[#allocation4 + $0xb0] sm:$0xff]
    %v500 = vld [vmem:[#allocation4 + $0xb8] sm:$0xff]
    %v501 = vld [vmem:[#allocation4 + $0xc0] sm:$0xff]
    %v502 = vld [vmem:[#allocation4 + $0xc8] sm:$0xff]
    %v503 = vld [vmem:[#allocation4 + $0xd0] sm:$0xff]
    %v504 = vld [vmem:[#allocation4 + $0xd8] sm:$0xff]
    %v505 = vld [vmem:[#allocation4 + $0xe0] sm:$0xff]
    %v506 = vld [vmem:[#allocation4 + $0xe8] sm:$0xff]
    %v507 = vld [vmem:[#allocation4 + $0xf0] sm:$0xff]
    %v508 = vld [vmem:[#allocation4 + $0xf8] sm:$0xff]
    %v509 = vld [vmem:[#allocation4 + $0x100] sm:$0xff]
    %v510 = vld [vmem:[#allocation4 + $0x108] sm:$0xff]
    %v511 = vld [vmem:[#allocation4 + $0x110] sm:$0xff]
    %v512 = vld [vmem:[#allocation4 + $0x118] sm:$0xff]
    %v513 = vld [vmem:[#allocation4 + $0x120] sm:$0xff]
    %v514 = vld [vmem:[#allocation4 + $0x128] sm:$0xff]
    %v515 = vld [vmem:[#allocation4 + $0x130] sm:$0xff]
    %v516 = vld [vmem:[#allocation4 + $0x138] sm:$0xff]
    %v517 = vld [vmem:[#allocation4 + $0x140] sm:$0xff]
    %v518 = vld [vmem:[#allocation4 + $0x148] sm:$0xff]
    %v519 = vld [vmem:[#allocation4 + $0x150] sm:$0xff]
    %v520 = vld [vmem:[#allocation4 + $0x158] sm:$0xff]
    %v521 = vld [vmem:[#allocation4 + $0x160] sm:$0xff]
    %v522 = vld [vmem:[#allocation4 + $0x168] sm:$0xff]
    %v523 = vld [vmem:[#allocation4 + $0x170] sm:$0xff]
    %v524 = vld [vmem:[#allocation4 + $0x178] sm:$0xff]
    %v525 = vld [vmem:[#allocation4 + $0x180] sm:$0xff]
    %v526 = vld [vmem:[#allocation4 + $0x188] sm:$0xff]
    %v527 = vld [vmem:[#allocation4 + $0x190] sm:$0xff]
    %v528 = vld [vmem:[#allocation4 + $0x198] sm:$0xff]
    %v529 = vld [vmem:[#allocation4 + $0x1a0] sm:$0xff]
    %v530 = vld [vmem:[#allocation4 + $0x1a8] sm:$0xff]
    %v531 = vld [vmem:[#allocation4 + $0x1b0] sm:$0xff]
    %v532 = vld [vmem:[#allocation4 + $0x1b8] sm:$0xff]
    %v533 = vld [vmem:[#allocation4 + $0x1c0] sm:$0xff]
    %v534 = vld [vmem:[#allocation4 + $0x1c8] sm:$0xff]
    %v535 = vld [vmem:[#allocation4 + $0x1d0] sm:$0xff]
    %v536 = vld [vmem:[#allocation4 + $0x1d8] sm:$0xff]
    %v537 = vld [vmem:[#allocation4 + $0x1e0] sm:$0xff]
    %v538 = vld [vmem:[#allocation4 + $0x1e8] sm:$0xff]
    %v539 = vld [vmem:[#allocation4 + $0x1f0] sm:$0xff]
    %v540 = vld [vmem:[#allocation4 + $0x1f8] sm:$0xff]
    %v541 = vld [vmem:[#allocation4 + $0x200] sm:$0xff]
    %v542 = vld [vmem:[#allocation4 + $0x208] sm:$0xff]
    %v543 = vld [vmem:[#allocation4 + $0x210] sm:$0xff]
    %v544 = vld [vmem:[#allocation4 + $0x218] sm:$0xff]
    %v545 = vld [vmem:[#allocation4 + $0x220] sm:$0xff]
    %v546 = vld [vmem:[#allocation4 + $0x228] sm:$0xff]
    %v547 = vld [vmem:[#allocation4 + $0x230] sm:$0xff]
    %v548 = vld [vmem:[#allocation4 + $0x238] sm:$0xff]
    %v549 = vld [vmem:[#allocation4 + $0x240] sm:$0xff]
    %v550 = vld [vmem:[#allocation4 + $0x248] sm:$0xff]
    %v551 = vld [vmem:[#allocation4 + $0x250] sm:$0xff]
    %v552 = vld [vmem:[#allocation4 + $0x258] sm:$0xff]
    %v553 = vld [vmem:[#allocation4 + $0x260] sm:$0xff]
    %v554 = vld [vmem:[#allocation4 + $0x268] sm:$0xff]
    %v555 = vld [vmem:[#allocation4 + $0x270] sm:$0xff]
    %v556 = vld [vmem:[#allocation4 + $0x278] sm:$0xff]
    %v557 = vld [vmem:[#allocation4 + $0x280] sm:$0xff]
    %v558 = vld [vmem:[#allocation4 + $0x288] sm:$0xff]
    %v559 = vld [vmem:[#allocation4 + $0x290] sm:$0xff]
    %v560 = vld [vmem:[#allocation4 + $0x298] sm:$0xff]
    %v561 = vld [vmem:[#allocation4 + $0x2a0] sm:$0xff]
    %v562 = vld [vmem:[#allocation4 + $0x2a8] sm:$0xff]
    %v563 = vld [vmem:[#allocation4 + $0x2b0] sm:$0xff]
    %v564 = vld [vmem:[#allocation4 + $0x2b8] sm:$0xff]
    %v565 = vld [vmem:[#allocation4 + $0x2c0] sm:$0xff]
    %v566 = vld [vmem:[#allocation4 + $0x2c8] sm:$0xff]
    %v567 = vld [vmem:[#allocation4 + $0x2d0] sm:$0xff]
    %v568 = vld [vmem:[#allocation4 + $0x2d8] sm:$0xff]
    %v569 = vld [vmem:[#allocation4 + $0x2e0] sm:$0xff]
    %v570 = vld [vmem:[#allocation4 + $0x2e8] sm:$0xff]
    %v571 = vld [vmem:[#allocation4 + $0x2f0] sm:$0xff]
    %v572 = vld [vmem:[#allocation4 + $0x2f8] sm:$0xff]
    %v573 = vld [vmem:[#allocation4 + $0x300] sm:$0xff]
    %v574 = vld [vmem:[#allocation4 + $0x308] sm:$0xff]
    %v575 = vld [vmem:[#allocation4 + $0x310] sm:$0xff]
    %v576 = vld [vmem:[#allocation4 + $0x318] sm:$0xff]
    %v577 = vld [vmem:[#allocation4 + $0x320] sm:$0xff]
    %v578 = vld [vmem:[#allocation4 + $0x328] sm:$0xff]
    %v579 = vld [vmem:[#allocation4 + $0x330] sm:$0xff]
    %v580 = vld [vmem:[#allocation4 + $0x338] sm:$0xff]
    %v581 = vld [vmem:[#allocation4 + $0x340] sm:$0xff]
    %v582 = vld [vmem:[#allocation4 + $0x348] sm:$0xff]
    %v583 = vld [vmem:[#allocation4 + $0x350] sm:$0xff]
    %v584 = vld [vmem:[#allocation4 + $0x358] sm:$0xff]
    %v585 = vld [vmem:[#allocation4 + $0x360] sm:$0xff]
    %v586 = vld [vmem:[#allocation4 + $0x368] sm:$0xff]
    %v587 = vld [vmem:[#allocation4 + $0x370] sm:$0xff]
    %v588 = vld [vmem:[#allocation4 + $0x378] sm:$0xff]
    %v589 = vld [vmem:[#allocation4 + $0x380] sm:$0xff]
    %v590 = vld [vmem:[#allocation4 + $0x388] sm:$0xff]
    %v591 = vld [vmem:[#allocation4 + $0x390] sm:$0xff]
    %v592 = vld [vmem:[#allocation4 + $0x398] sm:$0xff]
    %v593 = vld [vmem:[#allocation4 + $0x3a0] sm:$0xff]
    %v594 = vld [vmem:[#allocation4 + $0x3a8] sm:$0xff]
    %v595 = vld [vmem:[#allocation4 + $0x3b0] sm:$0xff]
    %v596 = vld [vmem:[#allocation4 + $0x3b8] sm:$0xff]
    %v597 = vld [vmem:[#allocation4 + $0x3c0] sm:$0xff]
    %v598 = vld [vmem:[#allocation4 + $0x3c8] sm:$0xff]
    %v599 = vld [vmem:[#allocation4 + $0x3d0] sm:$0xff]
    %v600 = vld [vmem:[#allocation4 + $0x3d8] sm:$0xff]
    %v601 = vld [vmem:[#allocation4 + $0x3e0] sm:$0xff]
    %v602 = vld [vmem:[#allocation4 + $0x3e8] sm:$0xff]
    %v603 = vld [vmem:[#allocation4 + $0x3f0] sm:$0xff]
    %v604 = vld [vmem:[#allocation4 + $0x3f8] sm:$0xff]
    %v605 = vld [vmem:[#allocation4 + $0x400] sm:$0xff]
    %v606 = vld [vmem:[#allocation4 + $0x408] sm:$0xff]
    %v607 = vld [vmem:[#allocation4 + $0x410] sm:$0xff]
    %v608 = vld [vmem:[#allocation4 + $0x418] sm:$0xff]
    %v609 = vld [vmem:[#allocation4 + $0x420] sm:$0xff]
    %v610 = vld [vmem:[#allocation4 + $0x428] sm:$0xff]
    %v611 = vld [vmem:[#allocation4 + $0x430] sm:$0xff]
    %v612 = vld [vmem:[#allocation4 + $0x438] sm:$0xff]
    %v613 = vld [vmem:[#allocation4 + $0x440] sm:$0xff]
    %v614 = vld [vmem:[#allocation4 + $0x448] sm:$0xff]
    %v615 = vld [vmem:[#allocation4 + $0x450] sm:$0xff]
    %v616 = vld [vmem:[#allocation4 + $0x458] sm:$0xff]
    %v617 = vld [vmem:[#allocation4 + $0x460] sm:$0xff]
    %v618 = vld [vmem:[#allocation4 + $0x468] sm:$0xff]
    %v619 = vld [vmem:[#allocation4 + $0x470] sm:$0xff]
    %v620 = vld [vmem:[#allocation4 + $0x478] sm:$0xff]
    %v621 = vld [vmem:[#allocation4 + $0x480] sm:$0xff]
    %v622 = vld [vmem:[#allocation4 + $0x488] sm:$0xff]
    %v623 = vld [vmem:[#allocation4 + $0x490] sm:$0xff]
    %v624 = vld [vmem:[#allocation4 + $0x498] sm:$0xff]
    %v625 = vld [vmem:[#allocation4 + $0x4a0] sm:$0xff]
    %v626 = vld [vmem:[#allocation4 + $0x4a8] sm:$0xff]
    %v627 = vld [vmem:[#allocation4 + $0x4b0] sm:$0xff]
    %v628 = vld [vmem:[#allocation4 + $0x4b8] sm:$0xff]
    %v629 = vld [vmem:[#allocation4 + $0x4c0] sm:$0xff]
    %v630 = vld [vmem:[#allocation4 + $0x4c8] sm:$0xff]
    %v631 = vld [vmem:[#allocation4 + $0x4d0] sm:$0xff]
    %v632 = vld [vmem:[#allocation4 + $0x4d8] sm:$0xff]
    %v633 = vld [vmem:[#allocation4 + $0x4e0] sm:$0xff]
    %v634 = vld [vmem:[#allocation4 + $0x4e8] sm:$0xff]
    %v635 = vld [vmem:[#allocation4 + $0x4f0] sm:$0xff]
    %v636 = vld [vmem:[#allocation4 + $0x4f8] sm:$0xff]
    %v637 = vld [vmem:[#allocation4 + $0x500] sm:$0xff]
    %v638 = vld [vmem:[#allocation4 + $0x508] sm:$0xff]
    %v639 = vld [vmem:[#allocation4 + $0x510] sm:$0xff]
    %v640 = vld [vmem:[#allocation4 + $0x518] sm:$0xff]
    %v641 = vld [vmem:[#allocation4 + $0x520] sm:$0xff]
    %v642 = vld [vmem:[#allocation4 + $0x528] sm:$0xff]
    %v643 = vld [vmem:[#allocation4 + $0x530] sm:$0xff]
    %v644 = vld [vmem:[#allocation4 + $0x538] sm:$0xff]
    %v645 = vld [vmem:[#allocation4 + $0x540] sm:$0xff]
    %v646 = vld [vmem:[#allocation4 + $0x548] sm:$0xff]
    %v647 = vld [vmem:[#allocation4 + $0x550] sm:$0xff]
    %v648 = vld [vmem:[#allocation4 + $0x558] sm:$0xff]
    %v649 = vld [vmem:[#allocation4 + $0x560] sm:$0xff]
    %v650 = vld [vmem:[#allocation4 + $0x568] sm:$0xff]
    %v651 = vld [vmem:[#allocation4 + $0x570] sm:$0xff]
    %v652 = vld [vmem:[#allocation4 + $0x578] sm:$0xff]
    %v653 = vld [vmem:[#allocation4 + $0x580] sm:$0xff]
    %v654 = vld [vmem:[#allocation4 + $0x588] sm:$0xff]
    %v655 = vld [vmem:[#allocation4 + $0x590] sm:$0xff]
    %v656 = vld [vmem:[#allocation4 + $0x598] sm:$0xff]
    %v657 = vld [vmem:[#allocation4 + $0x5a0] sm:$0xff]
    %v658 = vld [vmem:[#allocation4 + $0x5a8] sm:$0xff]
    %v659 = vld [vmem:[#allocation4 + $0x5b0] sm:$0xff]
    %v660 = vld [vmem:[#allocation4 + $0x5b8] sm:$0xff]
    %v661 = vld [vmem:[#allocation4 + $0x5c0] sm:$0xff]
    %v662 = vld [vmem:[#allocation4 + $0x5c8] sm:$0xff]
    %v663 = vld [vmem:[#allocation4 + $0x5d0] sm:$0xff]
    %v664 = vld [vmem:[#allocation4 + $0x5d8] sm:$0xff]
    %v665 = vld [vmem:[#allocation4 + $0x5e0] sm:$0xff]
    %v666 = vld [vmem:[#allocation4 + $0x5e8] sm:$0xff]
    %v667 = vld [vmem:[#allocation4 + $0x5f0] sm:$0xff]
    %v668 = vld [vmem:[#allocation4 + $0x5f8] sm:$0xff]
    %v669 = vld [vmem:[#allocation4 + $0x600] sm:$0xff]
    %v670 = vld [vmem:[#allocation4 + $0x608] sm:$0xff]
    %v671 = vld [vmem:[#allocation4 + $0x610] sm:$0xff]
    %v672 = vld [vmem:[#allocation4 + $0x618] sm:$0xff]
    %v673 = vld [vmem:[#allocation4 + $0x620] sm:$0xff]
    %v674 = vld [vmem:[#allocation4 + $0x628] sm:$0xff]
    %v675 = vld [vmem:[#allocation4 + $0x630] sm:$0xff]
    %v676 = vld [vmem:[#allocation4 + $0x638] sm:$0xff]
    %v677 = vld [vmem:[#allocation4 + $0x640] sm:$0xff]
    %v678 = vld [vmem:[#allocation4 + $0x648] sm:$0xff]
    %v679 = vld [vmem:[#allocation4 + $0x650] sm:$0xff]
    %v680 = vld [vmem:[#allocation4 + $0x658] sm:$0xff]
    %v681 = vld [vmem:[#allocation4 + $0x660] sm:$0xff]
    %v682 = vld [vmem:[#allocation4 + $0x668] sm:$0xff]
    %v683 = vld [vmem:[#allocation4 + $0x670] sm:$0xff]
    %v684 = vld [vmem:[#allocation4 + $0x678] sm:$0xff]
    %v685 = vld [vmem:[#allocation4 + $0x680] sm:$0xff]
    %v686 = vld [vmem:[#allocation4 + $0x688] sm:$0xff]
    %v687 = vld [vmem:[#allocation4 + $0x690] sm:$0xff]
    %v688 = vld [vmem:[#allocation4 + $0x698] sm:$0xff]
    %v689 = vld [vmem:[#allocation4 + $0x6a0] sm:$0xff]
    %v690 = vld [vmem:[#allocation4 + $0x6a8] sm:$0xff]
    %v691 = vld [vmem:[#allocation4 + $0x6b0] sm:$0xff]
    %v692 = vld [vmem:[#allocation4 + $0x6b8] sm:$0xff]
    %v693 = vld [vmem:[#allocation4 + $0x6c0] sm:$0xff]
    %v694 = vld [vmem:[#allocation4 + $0x6c8] sm:$0xff]
    %v695 = vld [vmem:[#allocation4 + $0x6d0] sm:$0xff]
    %v696 = vld [vmem:[#allocation4 + $0x6d8] sm:$0xff]
    %v697 = vld [vmem:[#allocation4 + $0x6e0] sm:$0xff]
    %v698 = vld [vmem:[#allocation4 + $0x6e8] sm:$0xff]
    %v699 = vld [vmem:[#allocation4 + $0x6f0] sm:$0xff]
    %v700 = vld [vmem:[#allocation4 + $0x6f8] sm:$0xff]
    %v701 = vld [vmem:[#allocation4 + $0x700] sm:$0xff]
    %v702 = vld [vmem:[#allocation4 + $0x708] sm:$0xff]
    %v703 = vld [vmem:[#allocation4 + $0x710] sm:$0xff]
    %v704 = vld [vmem:[#allocation4 + $0x718] sm:$0xff]
    %v705 = vld [vmem:[#allocation4 + $0x720] sm:$0xff]
    %v706 = vld [vmem:[#allocation4 + $0x728] sm:$0xff]
    %v707 = vld [vmem:[#allocation4 + $0x730] sm:$0xff]
    %v708 = vld [vmem:[#allocation4 + $0x738] sm:$0xff]
    %v709 = vld [vmem:[#allocation4 + $0x740] sm:$0xff]
    %v710 = vld [vmem:[#allocation4 + $0x748] sm:$0xff]
    %v711 = vld [vmem:[#allocation4 + $0x750] sm:$0xff]
    %v712 = vld [vmem:[#allocation4 + $0x758] sm:$0xff]
    %v713 = vld [vmem:[#allocation4 + $0x760] sm:$0xff]
    %v714 = vld [vmem:[#allocation4 + $0x768] sm:$0xff]
    %v715 = vld [vmem:[#allocation4 + $0x770] sm:$0xff]
    %v716 = vld [vmem:[#allocation4 + $0x778] sm:$0xff]
    %v717 = vld [vmem:[#allocation4 + $0x780] sm:$0xff]
    %v718 = vld [vmem:[#allocation4 + $0x788] sm:$0xff]
    %v719 = vld [vmem:[#allocation4 + $0x790] sm:$0xff]
    %v720 = vld [vmem:[#allocation4 + $0x798] sm:$0xff]
    %v721 = vld [vmem:[#allocation4 + $0x7a0] sm:$0xff]
    %v722 = vld [vmem:[#allocation4 + $0x7a8] sm:$0xff]
    %v723 = vld [vmem:[#allocation4 + $0x7b0] sm:$0xff]
    %v724 = vld [vmem:[#allocation4 + $0x7b8] sm:$0xff]
    %v725 = vld [vmem:[#allocation4 + $0x7c0] sm:$0xff]
    %v726 = vld [vmem:[#allocation4 + $0x7c8] sm:$0xff]
    %v727 = vld [vmem:[#allocation4 + $0x7d0] sm:$0xff]
    %v728 = vld [vmem:[#allocation4 + $0x7d8] sm:$0xff]
    %v729 = vld [vmem:[#allocation4 + $0x7e0] sm:$0xff]
    %v730 = vld [vmem:[#allocation4 + $0x7e8] sm:$0xff]
    %v731 = vld [vmem:[#allocation4 + $0x7f0] sm:$0xff]
    %v732 = vld [vmem:[#allocation4 + $0x7f8] sm:$0xff]
    %v733 = vld [vmem:[%s6] sm:$0xff]
    %v735 = vlaneseq
    %v736 = vshrl.u32 %v735, 7
    %v737 = vsub.s32 0, %v736
    %v738 = vrot.slane %v733, %v737
    %v739 = vlaneseq
    %v740 = vshrl.u32 %v739, 7
    %v741 = vsub.s32 1, %v740
    %v742 = vrot.slane %v733, %v741
    %v743 = vlaneseq
    %v744 = vshrl.u32 %v743, 7
    %v745 = vsub.s32 2, %v744
    %v746 = vrot.slane %v733, %v745
    %v747 = vlaneseq
    %v748 = vshrl.u32 %v747, 7
    %v749 = vsub.s32 3, %v748
    %v750 = vrot.slane %v733, %v749
    %v751 = vlaneseq
    %v752 = vshrl.u32 %v751, 7
    %v753 = vsub.s32 4, %v752
    %v754 = vrot.slane %v733, %v753
    %v755 = vlaneseq
    %v756 = vshrl.u32 %v755, 7
    %v757 = vsub.s32 5, %v756
    %v758 = vrot.slane %v733, %v757
    %v759 = vlaneseq
    %v760 = vshrl.u32 %v759, 7
    %v761 = vsub.s32 6, %v760
    %v762 = vrot.slane %v733, %v761
    %v763 = vlaneseq
    %v764 = vshrl.u32 %v763, 7
    %v765 = vsub.s32 7, %v764
    %v766 = vrot.slane %v733, %v765
    %v1031 = vunpack.c.l.b16 %v477
    %v1032 = vunpack.c.h.b16 %v477
    %v1033 = vunpack.c.l.b16 %v478
    %v1034 = vunpack.c.h.b16 %v478
    %v1035 = vunpack.c.l.b16 %v479
    %v1036 = vunpack.c.h.b16 %v479
    %v1037 = vunpack.c.l.b16 %v480
    %v1038 = vunpack.c.h.b16 %v480
    %v1039 = vunpack.c.l.b16 %v481
    %v1040 = vunpack.c.h.b16 %v481
    %v1041 = vunpack.c.l.b16 %v482
    %v1042 = vunpack.c.h.b16 %v482
    %v1043 = vunpack.c.l.b16 %v483
    %v1044 = vunpack.c.h.b16 %v483
    %v1045 = vunpack.c.l.b16 %v484
    %v1046 = vunpack.c.h.b16 %v484
    %v1047 = vunpack.c.l.b16 %v485
    %v1048 = vunpack.c.h.b16 %v485
    %v1049 = vunpack.c.l.b16 %v486
    %v1050 = vunpack.c.h.b16 %v486
    %v1051 = vunpack.c.l.b16 %v487
    %v1052 = vunpack.c.h.b16 %v487
    %v1053 = vunpack.c.l.b16 %v488
    %v1054 = vunpack.c.h.b16 %v488
    %v1055 = vunpack.c.l.b16 %v489
    %v1056 = vunpack.c.h.b16 %v489
    %v1057 = vunpack.c.l.b16 %v490
    %v1058 = vunpack.c.h.b16 %v490
    %v1059 = vunpack.c.l.b16 %v491
    %v1060 = vunpack.c.h.b16 %v491
    %v1061 = vunpack.c.l.b16 %v492
    %v1062 = vunpack.c.h.b16 %v492
    %v1063 = vunpack.c.l.b16 %v493
    %v1064 = vunpack.c.h.b16 %v493
    %v1065 = vunpack.c.l.b16 %v494
    %v1066 = vunpack.c.h.b16 %v494
    %v1067 = vunpack.c.l.b16 %v495
    %v1068 = vunpack.c.h.b16 %v495
    %v1069 = vunpack.c.l.b16 %v496
    %v1070 = vunpack.c.h.b16 %v496
    %v1071 = vunpack.c.l.b16 %v497
    %v1072 = vunpack.c.h.b16 %v497
    %v1073 = vunpack.c.l.b16 %v498
    %v1074 = vunpack.c.h.b16 %v498
    %v1075 = vunpack.c.l.b16 %v499
    %v1076 = vunpack.c.h.b16 %v499
    %v1077 = vunpack.c.l.b16 %v500
    %v1078 = vunpack.c.h.b16 %v500
    %v1079 = vunpack.c.l.b16 %v501
    %v1080 = vunpack.c.h.b16 %v501
    %v1081 = vunpack.c.l.b16 %v502
    %v1082 = vunpack.c.h.b16 %v502
    %v1083 = vunpack.c.l.b16 %v503
    %v1084 = vunpack.c.h.b16 %v503
    %v1085 = vunpack.c.l.b16 %v504
    %v1086 = vunpack.c.h.b16 %v504
    %v1087 = vunpack.c.l.b16 %v505
    %v1088 = vunpack.c.h.b16 %v505
    %v1089 = vunpack.c.l.b16 %v506
    %v1090 = vunpack.c.h.b16 %v506
    %v1091 = vunpack.c.l.b16 %v507
    %v1092 = vunpack.c.h.b16 %v507
    %v1093 = vunpack.c.l.b16 %v508
    %v1094 = vunpack.c.h.b16 %v508
    %v1095 = vunpack.c.l.b16 %v509
    %v1096 = vunpack.c.h.b16 %v509
    %v1097 = vunpack.c.l.b16 %v510
    %v1098 = vunpack.c.h.b16 %v510
    %v1099 = vunpack.c.l.b16 %v511
    %v1100 = vunpack.c.h.b16 %v511
    %v1101 = vunpack.c.l.b16 %v512
    %v1102 = vunpack.c.h.b16 %v512
    %v1103 = vunpack.c.l.b16 %v513
    %v1104 = vunpack.c.h.b16 %v513
    %v1105 = vunpack.c.l.b16 %v514
    %v1106 = vunpack.c.h.b16 %v514
    %v1107 = vunpack.c.l.b16 %v515
    %v1108 = vunpack.c.h.b16 %v515
    %v1109 = vunpack.c.l.b16 %v516
    %v1110 = vunpack.c.h.b16 %v516
    %v1111 = vunpack.c.l.b16 %v517
    %v1112 = vunpack.c.h.b16 %v517
    %v1113 = vunpack.c.l.b16 %v518
    %v1114 = vunpack.c.h.b16 %v518
    %v1115 = vunpack.c.l.b16 %v519
    %v1116 = vunpack.c.h.b16 %v519
    %v1117 = vunpack.c.l.b16 %v520
    %v1118 = vunpack.c.h.b16 %v520
    %v1119 = vunpack.c.l.b16 %v521
    %v1120 = vunpack.c.h.b16 %v521
    %v1121 = vunpack.c.l.b16 %v522
    %v1122 = vunpack.c.h.b16 %v522
    %v1123 = vunpack.c.l.b16 %v523
    %v1124 = vunpack.c.h.b16 %v523
    %v1125 = vunpack.c.l.b16 %v524
    %v1126 = vunpack.c.h.b16 %v524
    %v1127 = vunpack.c.l.b16 %v525
    %v1128 = vunpack.c.h.b16 %v525
    %v1129 = vunpack.c.l.b16 %v526
    %v1130 = vunpack.c.h.b16 %v526
    %v1131 = vunpack.c.l.b16 %v527
    %v1132 = vunpack.c.h.b16 %v527
    %v1133 = vunpack.c.l.b16 %v528
    %v1134 = vunpack.c.h.b16 %v528
    %v1135 = vunpack.c.l.b16 %v529
    %v1136 = vunpack.c.h.b16 %v529
    %v1137 = vunpack.c.l.b16 %v530
    %v1138 = vunpack.c.h.b16 %v530
    %v1139 = vunpack.c.l.b16 %v531
    %v1140 = vunpack.c.h.b16 %v531
    %v1141 = vunpack.c.l.b16 %v532
    %v1142 = vunpack.c.h.b16 %v532
    %v1143 = vunpack.c.l.b16 %v533
    %v1144 = vunpack.c.h.b16 %v533
    %v1145 = vunpack.c.l.b16 %v534
    %v1146 = vunpack.c.h.b16 %v534
    %v1147 = vunpack.c.l.b16 %v535
    %v1148 = vunpack.c.h.b16 %v535
    %v1149 = vunpack.c.l.b16 %v536
    %v1150 = vunpack.c.h.b16 %v536
    %v1151 = vunpack.c.l.b16 %v537
    %v1152 = vunpack.c.h.b16 %v537
    %v1153 = vunpack.c.l.b16 %v538
    %v1154 = vunpack.c.h.b16 %v538
    %v1155 = vunpack.c.l.b16 %v539
    %v1156 = vunpack.c.h.b16 %v539
    %v1157 = vunpack.c.l.b16 %v540
    %v1158 = vunpack.c.h.b16 %v540
    %v1159 = vunpack.c.l.b16 %v541
    %v1160 = vunpack.c.h.b16 %v541
    %v1161 = vunpack.c.l.b16 %v542
    %v1162 = vunpack.c.h.b16 %v542
    %v1163 = vunpack.c.l.b16 %v543
    %v1164 = vunpack.c.h.b16 %v543
    %v1165 = vunpack.c.l.b16 %v544
    %v1166 = vunpack.c.h.b16 %v544
    %v1167 = vunpack.c.l.b16 %v545
    %v1168 = vunpack.c.h.b16 %v545
    %v1169 = vunpack.c.l.b16 %v546
    %v1170 = vunpack.c.h.b16 %v546
    %v1171 = vunpack.c.l.b16 %v547
    %v1172 = vunpack.c.h.b16 %v547
    %v1173 = vunpack.c.l.b16 %v548
    %v1174 = vunpack.c.h.b16 %v548
    %v1175 = vunpack.c.l.b16 %v549
    %v1176 = vunpack.c.h.b16 %v549
    %v1177 = vunpack.c.l.b16 %v550
    %v1178 = vunpack.c.h.b16 %v550
    %v1179 = vunpack.c.l.b16 %v551
    %v1180 = vunpack.c.h.b16 %v551
    %v1181 = vunpack.c.l.b16 %v552
    %v1182 = vunpack.c.h.b16 %v552
    %v1183 = vunpack.c.l.b16 %v553
    %v1184 = vunpack.c.h.b16 %v553
    %v1185 = vunpack.c.l.b16 %v554
    %v1186 = vunpack.c.h.b16 %v554
    %v1187 = vunpack.c.l.b16 %v555
    %v1188 = vunpack.c.h.b16 %v555
    %v1189 = vunpack.c.l.b16 %v556
    %v1190 = vunpack.c.h.b16 %v556
    %v1191 = vunpack.c.l.b16 %v557
    %v1192 = vunpack.c.h.b16 %v557
    %v1193 = vunpack.c.l.b16 %v558
    %v1194 = vunpack.c.h.b16 %v558
    %v1195 = vunpack.c.l.b16 %v559
    %v1196 = vunpack.c.h.b16 %v559
    %v1197 = vunpack.c.l.b16 %v560
    %v1198 = vunpack.c.h.b16 %v560
    %v1199 = vunpack.c.l.b16 %v561
    %v1200 = vunpack.c.h.b16 %v561
    %v1201 = vunpack.c.l.b16 %v562
    %v1202 = vunpack.c.h.b16 %v562
    %v1203 = vunpack.c.l.b16 %v563
    %v1204 = vunpack.c.h.b16 %v563
    %v1205 = vunpack.c.l.b16 %v564
    %v1206 = vunpack.c.h.b16 %v564
    %v1207 = vunpack.c.l.b16 %v565
    %v1208 = vunpack.c.h.b16 %v565
    %v1209 = vunpack.c.l.b16 %v566
    %v1210 = vunpack.c.h.b16 %v566
    %v1211 = vunpack.c.l.b16 %v567
    %v1212 = vunpack.c.h.b16 %v567
    %v1213 = vunpack.c.l.b16 %v568
    %v1214 = vunpack.c.h.b16 %v568
    %v1215 = vunpack.c.l.b16 %v569
    %v1216 = vunpack.c.h.b16 %v569
    %v1217 = vunpack.c.l.b16 %v570
    %v1218 = vunpack.c.h.b16 %v570
    %v1219 = vunpack.c.l.b16 %v571
    %v1220 = vunpack.c.h.b16 %v571
    %v1221 = vunpack.c.l.b16 %v572
    %v1222 = vunpack.c.h.b16 %v572
    %v1223 = vunpack.c.l.b16 %v573
    %v1224 = vunpack.c.h.b16 %v573
    %v1225 = vunpack.c.l.b16 %v574
    %v1226 = vunpack.c.h.b16 %v574
    %v1227 = vunpack.c.l.b16 %v575
    %v1228 = vunpack.c.h.b16 %v575
    %v1229 = vunpack.c.l.b16 %v576
    %v1230 = vunpack.c.h.b16 %v576
    %v1231 = vunpack.c.l.b16 %v577
    %v1232 = vunpack.c.h.b16 %v577
    %v1233 = vunpack.c.l.b16 %v578
    %v1234 = vunpack.c.h.b16 %v578
    %v1235 = vunpack.c.l.b16 %v579
    %v1236 = vunpack.c.h.b16 %v579
    %v1237 = vunpack.c.l.b16 %v580
    %v1238 = vunpack.c.h.b16 %v580
    %v1239 = vunpack.c.l.b16 %v581
    %v1240 = vunpack.c.h.b16 %v581
    %v1241 = vunpack.c.l.b16 %v582
    %v1242 = vunpack.c.h.b16 %v582
    %v1243 = vunpack.c.l.b16 %v583
    %v1244 = vunpack.c.h.b16 %v583
    %v1245 = vunpack.c.l.b16 %v584
    %v1246 = vunpack.c.h.b16 %v584
    %v1247 = vunpack.c.l.b16 %v585
    %v1248 = vunpack.c.h.b16 %v585
    %v1249 = vunpack.c.l.b16 %v586
    %v1250 = vunpack.c.h.b16 %v586
    %v1251 = vunpack.c.l.b16 %v587
    %v1252 = vunpack.c.h.b16 %v587
    %v1253 = vunpack.c.l.b16 %v588
    %v1254 = vunpack.c.h.b16 %v588
    %v1255 = vunpack.c.l.b16 %v589
    %v1256 = vunpack.c.h.b16 %v589
    %v1257 = vunpack.c.l.b16 %v590
    %v1258 = vunpack.c.h.b16 %v590
    %v1259 = vunpack.c.l.b16 %v591
    %v1260 = vunpack.c.h.b16 %v591
    %v1261 = vunpack.c.l.b16 %v592
    %v1262 = vunpack.c.h.b16 %v592
    %v1263 = vunpack.c.l.b16 %v593
    %v1264 = vunpack.c.h.b16 %v593
    %v1265 = vunpack.c.l.b16 %v594
    %v1266 = vunpack.c.h.b16 %v594
    %v1267 = vunpack.c.l.b16 %v595
    %v1268 = vunpack.c.h.b16 %v595
    %v1269 = vunpack.c.l.b16 %v596
    %v1270 = vunpack.c.h.b16 %v596
    %v1271 = vunpack.c.l.b16 %v597
    %v1272 = vunpack.c.h.b16 %v597
    %v1273 = vunpack.c.l.b16 %v598
    %v1274 = vunpack.c.h.b16 %v598
    %v1275 = vunpack.c.l.b16 %v599
    %v1276 = vunpack.c.h.b16 %v599
    %v1277 = vunpack.c.l.b16 %v600
    %v1278 = vunpack.c.h.b16 %v600
    %v1279 = vunpack.c.l.b16 %v601
    %v1280 = vunpack.c.h.b16 %v601
    %v1281 = vunpack.c.l.b16 %v602
    %v1282 = vunpack.c.h.b16 %v602
    %v1283 = vunpack.c.l.b16 %v603
    %v1284 = vunpack.c.h.b16 %v603
    %v1285 = vunpack.c.l.b16 %v604
    %v1286 = vunpack.c.h.b16 %v604
    %v1287 = vunpack.c.l.b16 %v605
    %v1288 = vunpack.c.h.b16 %v605
    %v1289 = vunpack.c.l.b16 %v606
    %v1290 = vunpack.c.h.b16 %v606
    %v1291 = vunpack.c.l.b16 %v607
    %v1292 = vunpack.c.h.b16 %v607
    %v1293 = vunpack.c.l.b16 %v608
    %v1294 = vunpack.c.h.b16 %v608
    %v1295 = vunpack.c.l.b16 %v609
    %v1296 = vunpack.c.h.b16 %v609
    %v1297 = vunpack.c.l.b16 %v610
    %v1298 = vunpack.c.h.b16 %v610
    %v1299 = vunpack.c.l.b16 %v611
    %v1300 = vunpack.c.h.b16 %v611
    %v1301 = vunpack.c.l.b16 %v612
    %v1302 = vunpack.c.h.b16 %v612
    %v1303 = vunpack.c.l.b16 %v613
    %v1304 = vunpack.c.h.b16 %v613
    %v1305 = vunpack.c.l.b16 %v614
    %v1306 = vunpack.c.h.b16 %v614
    %v1307 = vunpack.c.l.b16 %v615
    %v1308 = vunpack.c.h.b16 %v615
    %v1309 = vunpack.c.l.b16 %v616
    %v1310 = vunpack.c.h.b16 %v616
    %v1311 = vunpack.c.l.b16 %v617
    %v1312 = vunpack.c.h.b16 %v617
    %v1313 = vunpack.c.l.b16 %v618
    %v1314 = vunpack.c.h.b16 %v618
    %v1315 = vunpack.c.l.b16 %v619
    %v1316 = vunpack.c.h.b16 %v619
    %v1317 = vunpack.c.l.b16 %v620
    %v1318 = vunpack.c.h.b16 %v620
    %v1319 = vunpack.c.l.b16 %v621
    %v1320 = vunpack.c.h.b16 %v621
    %v1321 = vunpack.c.l.b16 %v622
    %v1322 = vunpack.c.h.b16 %v622
    %v1323 = vunpack.c.l.b16 %v623
    %v1324 = vunpack.c.h.b16 %v623
    %v1325 = vunpack.c.l.b16 %v624
    %v1326 = vunpack.c.h.b16 %v624
    %v1327 = vunpack.c.l.b16 %v625
    %v1328 = vunpack.c.h.b16 %v625
    %v1329 = vunpack.c.l.b16 %v626
    %v1330 = vunpack.c.h.b16 %v626
    %v1331 = vunpack.c.l.b16 %v627
    %v1332 = vunpack.c.h.b16 %v627
    %v1333 = vunpack.c.l.b16 %v628
    %v1334 = vunpack.c.h.b16 %v628
    %v1335 = vunpack.c.l.b16 %v629
    %v1336 = vunpack.c.h.b16 %v629
    %v1337 = vunpack.c.l.b16 %v630
    %v1338 = vunpack.c.h.b16 %v630
    %v1339 = vunpack.c.l.b16 %v631
    %v1340 = vunpack.c.h.b16 %v631
    %v1341 = vunpack.c.l.b16 %v632
    %v1342 = vunpack.c.h.b16 %v632
    %v1343 = vunpack.c.l.b16 %v633
    %v1344 = vunpack.c.h.b16 %v633
    %v1345 = vunpack.c.l.b16 %v634
    %v1346 = vunpack.c.h.b16 %v634
    %v1347 = vunpack.c.l.b16 %v635
    %v1348 = vunpack.c.h.b16 %v635
    %v1349 = vunpack.c.l.b16 %v636
    %v1350 = vunpack.c.h.b16 %v636
    %v1351 = vunpack.c.l.b16 %v637
    %v1352 = vunpack.c.h.b16 %v637
    %v1353 = vunpack.c.l.b16 %v638
    %v1354 = vunpack.c.h.b16 %v638
    %v1355 = vunpack.c.l.b16 %v639
    %v1356 = vunpack.c.h.b16 %v639
    %v1357 = vunpack.c.l.b16 %v640
    %v1358 = vunpack.c.h.b16 %v640
    %v1359 = vunpack.c.l.b16 %v641
    %v1360 = vunpack.c.h.b16 %v641
    %v1361 = vunpack.c.l.b16 %v642
    %v1362 = vunpack.c.h.b16 %v642
    %v1363 = vunpack.c.l.b16 %v643
    %v1364 = vunpack.c.h.b16 %v643
    %v1365 = vunpack.c.l.b16 %v644
    %v1366 = vunpack.c.h.b16 %v644
    %v1367 = vunpack.c.l.b16 %v645
    %v1368 = vunpack.c.h.b16 %v645
    %v1369 = vunpack.c.l.b16 %v646
    %v1370 = vunpack.c.h.b16 %v646
    %v1371 = vunpack.c.l.b16 %v647
    %v1372 = vunpack.c.h.b16 %v647
    %v1373 = vunpack.c.l.b16 %v648
    %v1374 = vunpack.c.h.b16 %v648
    %v1375 = vunpack.c.l.b16 %v649
    %v1376 = vunpack.c.h.b16 %v649
    %v1377 = vunpack.c.l.b16 %v650
    %v1378 = vunpack.c.h.b16 %v650
    %v1379 = vunpack.c.l.b16 %v651
    %v1380 = vunpack.c.h.b16 %v651
    %v1381 = vunpack.c.l.b16 %v652
    %v1382 = vunpack.c.h.b16 %v652
    %v1383 = vunpack.c.l.b16 %v653
    %v1384 = vunpack.c.h.b16 %v653
    %v1385 = vunpack.c.l.b16 %v654
    %v1386 = vunpack.c.h.b16 %v654
    %v1387 = vunpack.c.l.b16 %v655
    %v1388 = vunpack.c.h.b16 %v655
    %v1389 = vunpack.c.l.b16 %v656
    %v1390 = vunpack.c.h.b16 %v656
    %v1391 = vunpack.c.l.b16 %v657
    %v1392 = vunpack.c.h.b16 %v657
    %v1393 = vunpack.c.l.b16 %v658
    %v1394 = vunpack.c.h.b16 %v658
    %v1395 = vunpack.c.l.b16 %v659
    %v1396 = vunpack.c.h.b16 %v659
    %v1397 = vunpack.c.l.b16 %v660
    %v1398 = vunpack.c.h.b16 %v660
    %v1399 = vunpack.c.l.b16 %v661
    %v1400 = vunpack.c.h.b16 %v661
    %v1401 = vunpack.c.l.b16 %v662
    %v1402 = vunpack.c.h.b16 %v662
    %v1403 = vunpack.c.l.b16 %v663
    %v1404 = vunpack.c.h.b16 %v663
    %v1405 = vunpack.c.l.b16 %v664
    %v1406 = vunpack.c.h.b16 %v664
    %v1407 = vunpack.c.l.b16 %v665
    %v1408 = vunpack.c.h.b16 %v665
    %v1409 = vunpack.c.l.b16 %v666
    %v1410 = vunpack.c.h.b16 %v666
    %v1411 = vunpack.c.l.b16 %v667
    %v1412 = vunpack.c.h.b16 %v667
    %v1413 = vunpack.c.l.b16 %v668
    %v1414 = vunpack.c.h.b16 %v668
    %v1415 = vunpack.c.l.b16 %v669
    %v1416 = vunpack.c.h.b16 %v669
    %v1417 = vunpack.c.l.b16 %v670
    %v1418 = vunpack.c.h.b16 %v670
    %v1419 = vunpack.c.l.b16 %v671
    %v1420 = vunpack.c.h.b16 %v671
    %v1421 = vunpack.c.l.b16 %v672
    %v1422 = vunpack.c.h.b16 %v672
    %v1423 = vunpack.c.l.b16 %v673
    %v1424 = vunpack.c.h.b16 %v673
    %v1425 = vunpack.c.l.b16 %v674
    %v1426 = vunpack.c.h.b16 %v674
    %v1427 = vunpack.c.l.b16 %v675
    %v1428 = vunpack.c.h.b16 %v675
    %v1429 = vunpack.c.l.b16 %v676
    %v1430 = vunpack.c.h.b16 %v676
    %v1431 = vunpack.c.l.b16 %v677
    %v1432 = vunpack.c.h.b16 %v677
    %v1433 = vunpack.c.l.b16 %v678
    %v1434 = vunpack.c.h.b16 %v678
    %v1435 = vunpack.c.l.b16 %v679
    %v1436 = vunpack.c.h.b16 %v679
    %v1437 = vunpack.c.l.b16 %v680
    %v1438 = vunpack.c.h.b16 %v680
    %v1439 = vunpack.c.l.b16 %v681
    %v1440 = vunpack.c.h.b16 %v681
    %v1441 = vunpack.c.l.b16 %v682
    %v1442 = vunpack.c.h.b16 %v682
    %v1443 = vunpack.c.l.b16 %v683
    %v1444 = vunpack.c.h.b16 %v683
    %v1445 = vunpack.c.l.b16 %v684
    %v1446 = vunpack.c.h.b16 %v684
    %v1447 = vunpack.c.l.b16 %v685
    %v1448 = vunpack.c.h.b16 %v685
    %v1449 = vunpack.c.l.b16 %v686
    %v1450 = vunpack.c.h.b16 %v686
    %v1451 = vunpack.c.l.b16 %v687
    %v1452 = vunpack.c.h.b16 %v687
    %v1453 = vunpack.c.l.b16 %v688
    %v1454 = vunpack.c.h.b16 %v688
    %v1455 = vunpack.c.l.b16 %v689
    %v1456 = vunpack.c.h.b16 %v689
    %v1457 = vunpack.c.l.b16 %v690
    %v1458 = vunpack.c.h.b16 %v690
    %v1459 = vunpack.c.l.b16 %v691
    %v1460 = vunpack.c.h.b16 %v691
    %v1461 = vunpack.c.l.b16 %v692
    %v1462 = vunpack.c.h.b16 %v692
    %v1463 = vunpack.c.l.b16 %v693
    %v1464 = vunpack.c.h.b16 %v693
    %v1465 = vunpack.c.l.b16 %v694
    %v1466 = vunpack.c.h.b16 %v694
    %v1467 = vunpack.c.l.b16 %v695
    %v1468 = vunpack.c.h.b16 %v695
    %v1469 = vunpack.c.l.b16 %v696
    %v1470 = vunpack.c.h.b16 %v696
    %v1471 = vunpack.c.l.b16 %v697
    %v1472 = vunpack.c.h.b16 %v697
    %v1473 = vunpack.c.l.b16 %v698
    %v1474 = vunpack.c.h.b16 %v698
    %v1475 = vunpack.c.l.b16 %v699
    %v1476 = vunpack.c.h.b16 %v699
    %v1477 = vunpack.c.l.b16 %v700
    %v1478 = vunpack.c.h.b16 %v700
    %v1479 = vunpack.c.l.b16 %v701
    %v1480 = vunpack.c.h.b16 %v701
    %v1481 = vunpack.c.l.b16 %v702
    %v1482 = vunpack.c.h.b16 %v702
    %v1483 = vunpack.c.l.b16 %v703
    %v1484 = vunpack.c.h.b16 %v703
    %v1485 = vunpack.c.l.b16 %v704
    %v1486 = vunpack.c.h.b16 %v704
    %v1487 = vunpack.c.l.b16 %v705
    %v1488 = vunpack.c.h.b16 %v705
    %v1489 = vunpack.c.l.b16 %v706
    %v1490 = vunpack.c.h.b16 %v706
    %v1491 = vunpack.c.l.b16 %v707
    %v1492 = vunpack.c.h.b16 %v707
    %v1493 = vunpack.c.l.b16 %v708
    %v1494 = vunpack.c.h.b16 %v708
    %v1495 = vunpack.c.l.b16 %v709
    %v1496 = vunpack.c.h.b16 %v709
    %v1497 = vunpack.c.l.b16 %v710
    %v1498 = vunpack.c.h.b16 %v710
    %v1499 = vunpack.c.l.b16 %v711
    %v1500 = vunpack.c.h.b16 %v711
    %v1501 = vunpack.c.l.b16 %v712
    %v1502 = vunpack.c.h.b16 %v712
    %v1503 = vunpack.c.l.b16 %v713
    %v1504 = vunpack.c.h.b16 %v713
    %v1505 = vunpack.c.l.b16 %v714
    %v1506 = vunpack.c.h.b16 %v714
    %v1507 = vunpack.c.l.b16 %v715
    %v1508 = vunpack.c.h.b16 %v715
    %v1509 = vunpack.c.l.b16 %v716
    %v1510 = vunpack.c.h.b16 %v716
    %v1511 = vunpack.c.l.b16 %v717
    %v1512 = vunpack.c.h.b16 %v717
    %v1513 = vunpack.c.l.b16 %v718
    %v1514 = vunpack.c.h.b16 %v718
    %v1515 = vunpack.c.l.b16 %v719
    %v1516 = vunpack.c.h.b16 %v719
    %v1517 = vunpack.c.l.b16 %v720
    %v1518 = vunpack.c.h.b16 %v720
    %v1519 = vunpack.c.l.b16 %v721
    %v1520 = vunpack.c.h.b16 %v721
    %v1521 = vunpack.c.l.b16 %v722
    %v1522 = vunpack.c.h.b16 %v722
    %v1523 = vunpack.c.l.b16 %v723
    %v1524 = vunpack.c.h.b16 %v723
    %v1525 = vunpack.c.l.b16 %v724
    %v1526 = vunpack.c.h.b16 %v724
    %v1527 = vunpack.c.l.b16 %v725
    %v1528 = vunpack.c.h.b16 %v725
    %v1529 = vunpack.c.l.b16 %v726
    %v1530 = vunpack.c.h.b16 %v726
    %v1531 = vunpack.c.l.b16 %v727
    %v1532 = vunpack.c.h.b16 %v727
    %v1533 = vunpack.c.l.b16 %v728
    %v1534 = vunpack.c.h.b16 %v728
    %v1535 = vunpack.c.l.b16 %v729
    %v1536 = vunpack.c.h.b16 %v729
    %v1537 = vunpack.c.l.b16 %v730
    %v1538 = vunpack.c.h.b16 %v730
    %v1539 = vunpack.c.l.b16 %v731
    %v1540 = vunpack.c.h.b16 %v731
    %v1541 = vunpack.c.l.b16 %v732
    %v1542 = vunpack.c.h.b16 %v732
    %v1543 = vpack.c.b16 %v1039, %v1031
    %v1544 = vpack.c.b16 %v1040, %v1032
    %v1545 = vpack.c.b16 %v1041, %v1033
    %v1546 = vpack.c.b16 %v1042, %v1034
    %v1547 = vpack.c.b16 %v1043, %v1035
    %v1548 = vpack.c.b16 %v1044, %v1036
    %v1549 = vpack.c.b16 %v1045, %v1037
    %v1550 = vpack.c.b16 %v1046, %v1038
    %v1551 = vpack.c.b16 %v1055, %v1047
    %v1552 = vpack.c.b16 %v1056, %v1048
    %v1553 = vpack.c.b16 %v1057, %v1049
    %v1554 = vpack.c.b16 %v1058, %v1050
    %v1555 = vpack.c.b16 %v1059, %v1051
    %v1556 = vpack.c.b16 %v1060, %v1052
    %v1557 = vpack.c.b16 %v1061, %v1053
    %v1558 = vpack.c.b16 %v1062, %v1054
    %v1559 = vpack.c.b16 %v1071, %v1063
    %v1560 = vpack.c.b16 %v1072, %v1064
    %v1561 = vpack.c.b16 %v1073, %v1065
    %v1562 = vpack.c.b16 %v1074, %v1066
    %v1563 = vpack.c.b16 %v1075, %v1067
    %v1564 = vpack.c.b16 %v1076, %v1068
    %v1565 = vpack.c.b16 %v1077, %v1069
    %v1566 = vpack.c.b16 %v1078, %v1070
    %v1567 = vpack.c.b16 %v1087, %v1079
    %v1568 = vpack.c.b16 %v1088, %v1080
    %v1569 = vpack.c.b16 %v1089, %v1081
    %v1570 = vpack.c.b16 %v1090, %v1082
    %v1571 = vpack.c.b16 %v1091, %v1083
    %v1572 = vpack.c.b16 %v1092, %v1084
    %v1573 = vpack.c.b16 %v1093, %v1085
    %v1574 = vpack.c.b16 %v1094, %v1086
    %v1575 = vpack.c.b16 %v1103, %v1095
    %v1576 = vpack.c.b16 %v1104, %v1096
    %v1577 = vpack.c.b16 %v1105, %v1097
    %v1578 = vpack.c.b16 %v1106, %v1098
    %v1579 = vpack.c.b16 %v1107, %v1099
    %v1580 = vpack.c.b16 %v1108, %v1100
    %v1581 = vpack.c.b16 %v1109, %v1101
    %v1582 = vpack.c.b16 %v1110, %v1102
    %v1583 = vpack.c.b16 %v1119, %v1111
    %v1584 = vpack.c.b16 %v1120, %v1112
    %v1585 = vpack.c.b16 %v1121, %v1113
    %v1586 = vpack.c.b16 %v1122, %v1114
    %v1587 = vpack.c.b16 %v1123, %v1115
    %v1588 = vpack.c.b16 %v1124, %v1116
    %v1589 = vpack.c.b16 %v1125, %v1117
    %v1590 = vpack.c.b16 %v1126, %v1118
    %v1591 = vpack.c.b16 %v1135, %v1127
    %v1592 = vpack.c.b16 %v1136, %v1128
    %v1593 = vpack.c.b16 %v1137, %v1129
    %v1594 = vpack.c.b16 %v1138, %v1130
    %v1595 = vpack.c.b16 %v1139, %v1131
    %v1596 = vpack.c.b16 %v1140, %v1132
    %v1597 = vpack.c.b16 %v1141, %v1133
    %v1598 = vpack.c.b16 %v1142, %v1134
    %v1599 = vpack.c.b16 %v1151, %v1143
    %v1600 = vpack.c.b16 %v1152, %v1144
    %v1601 = vpack.c.b16 %v1153, %v1145
    %v1602 = vpack.c.b16 %v1154, %v1146
    %v1603 = vpack.c.b16 %v1155, %v1147
    %v1604 = vpack.c.b16 %v1156, %v1148
    %v1605 = vpack.c.b16 %v1157, %v1149
    %v1606 = vpack.c.b16 %v1158, %v1150
    %v1607 = vpack.c.b16 %v1167, %v1159
    %v1608 = vpack.c.b16 %v1168, %v1160
    %v1609 = vpack.c.b16 %v1169, %v1161
    %v1610 = vpack.c.b16 %v1170, %v1162
    %v1611 = vpack.c.b16 %v1171, %v1163
    %v1612 = vpack.c.b16 %v1172, %v1164
    %v1613 = vpack.c.b16 %v1173, %v1165
    %v1614 = vpack.c.b16 %v1174, %v1166
    %v1615 = vpack.c.b16 %v1183, %v1175
    %v1616 = vpack.c.b16 %v1184, %v1176
    %v1617 = vpack.c.b16 %v1185, %v1177
    %v1618 = vpack.c.b16 %v1186, %v1178
    %v1619 = vpack.c.b16 %v1187, %v1179
    %v1620 = vpack.c.b16 %v1188, %v1180
    %v1621 = vpack.c.b16 %v1189, %v1181
    %v1622 = vpack.c.b16 %v1190, %v1182
    %v1623 = vpack.c.b16 %v1199, %v1191
    %v1624 = vpack.c.b16 %v1200, %v1192
    %v1625 = vpack.c.b16 %v1201, %v1193
    %v1626 = vpack.c.b16 %v1202, %v1194
    %v1627 = vpack.c.b16 %v1203, %v1195
    %v1628 = vpack.c.b16 %v1204, %v1196
    %v1629 = vpack.c.b16 %v1205, %v1197
    %v1630 = vpack.c.b16 %v1206, %v1198
    %v1631 = vpack.c.b16 %v1215, %v1207
    %v1632 = vpack.c.b16 %v1216, %v1208
    %v1633 = vpack.c.b16 %v1217, %v1209
    %v1634 = vpack.c.b16 %v1218, %v1210
    %v1635 = vpack.c.b16 %v1219, %v1211
    %v1636 = vpack.c.b16 %v1220, %v1212
    %v1637 = vpack.c.b16 %v1221, %v1213
    %v1638 = vpack.c.b16 %v1222, %v1214
    %v1639 = vpack.c.b16 %v1231, %v1223
    %v1640 = vpack.c.b16 %v1232, %v1224
    %v1641 = vpack.c.b16 %v1233, %v1225
    %v1642 = vpack.c.b16 %v1234, %v1226
    %v1643 = vpack.c.b16 %v1235, %v1227
    %v1644 = vpack.c.b16 %v1236, %v1228
    %v1645 = vpack.c.b16 %v1237, %v1229
    %v1646 = vpack.c.b16 %v1238, %v1230
    %v1647 = vpack.c.b16 %v1247, %v1239
    %v1648 = vpack.c.b16 %v1248, %v1240
    %v1649 = vpack.c.b16 %v1249, %v1241
    %v1650 = vpack.c.b16 %v1250, %v1242
    %v1651 = vpack.c.b16 %v1251, %v1243
    %v1652 = vpack.c.b16 %v1252, %v1244
    %v1653 = vpack.c.b16 %v1253, %v1245
    %v1654 = vpack.c.b16 %v1254, %v1246
    %v1655 = vpack.c.b16 %v1263, %v1255
    %v1656 = vpack.c.b16 %v1264, %v1256
    %v1657 = vpack.c.b16 %v1265, %v1257
    %v1658 = vpack.c.b16 %v1266, %v1258
    %v1659 = vpack.c.b16 %v1267, %v1259
    %v1660 = vpack.c.b16 %v1268, %v1260
    %v1661 = vpack.c.b16 %v1269, %v1261
    %v1662 = vpack.c.b16 %v1270, %v1262
    %v1663 = vpack.c.b16 %v1279, %v1271
    %v1664 = vpack.c.b16 %v1280, %v1272
    %v1665 = vpack.c.b16 %v1281, %v1273
    %v1666 = vpack.c.b16 %v1282, %v1274
    %v1667 = vpack.c.b16 %v1283, %v1275
    %v1668 = vpack.c.b16 %v1284, %v1276
    %v1669 = vpack.c.b16 %v1285, %v1277
    %v1670 = vpack.c.b16 %v1286, %v1278
    %v1671 = vpack.c.b16 %v1295, %v1287
    %v1672 = vpack.c.b16 %v1296, %v1288
    %v1673 = vpack.c.b16 %v1297, %v1289
    %v1674 = vpack.c.b16 %v1298, %v1290
    %v1675 = vpack.c.b16 %v1299, %v1291
    %v1676 = vpack.c.b16 %v1300, %v1292
    %v1677 = vpack.c.b16 %v1301, %v1293
    %v1678 = vpack.c.b16 %v1302, %v1294
    %v1679 = vpack.c.b16 %v1311, %v1303
    %v1680 = vpack.c.b16 %v1312, %v1304
    %v1681 = vpack.c.b16 %v1313, %v1305
    %v1682 = vpack.c.b16 %v1314, %v1306
    %v1683 = vpack.c.b16 %v1315, %v1307
    %v1684 = vpack.c.b16 %v1316, %v1308
    %v1685 = vpack.c.b16 %v1317, %v1309
    %v1686 = vpack.c.b16 %v1318, %v1310
    %v1687 = vpack.c.b16 %v1327, %v1319
    %v1688 = vpack.c.b16 %v1328, %v1320
    %v1689 = vpack.c.b16 %v1329, %v1321
    %v1690 = vpack.c.b16 %v1330, %v1322
    %v1691 = vpack.c.b16 %v1331, %v1323
    %v1692 = vpack.c.b16 %v1332, %v1324
    %v1693 = vpack.c.b16 %v1333, %v1325
    %v1694 = vpack.c.b16 %v1334, %v1326
    %v1695 = vpack.c.b16 %v1343, %v1335
    %v1696 = vpack.c.b16 %v1344, %v1336
    %v1697 = vpack.c.b16 %v1345, %v1337
    %v1698 = vpack.c.b16 %v1346, %v1338
    %v1699 = vpack.c.b16 %v1347, %v1339
    %v1700 = vpack.c.b16 %v1348, %v1340
    %v1701 = vpack.c.b16 %v1349, %v1341
    %v1702 = vpack.c.b16 %v1350, %v1342
    %v1703 = vpack.c.b16 %v1359, %v1351
    %v1704 = vpack.c.b16 %v1360, %v1352
    %v1705 = vpack.c.b16 %v1361, %v1353
    %v1706 = vpack.c.b16 %v1362, %v1354
    %v1707 = vpack.c.b16 %v1363, %v1355
    %v1708 = vpack.c.b16 %v1364, %v1356
    %v1709 = vpack.c.b16 %v1365, %v1357
    %v1710 = vpack.c.b16 %v1366, %v1358
    %v1711 = vpack.c.b16 %v1375, %v1367
    %v1712 = vpack.c.b16 %v1376, %v1368
    %v1713 = vpack.c.b16 %v1377, %v1369
    %v1714 = vpack.c.b16 %v1378, %v1370
    %v1715 = vpack.c.b16 %v1379, %v1371
    %v1716 = vpack.c.b16 %v1380, %v1372
    %v1717 = vpack.c.b16 %v1381, %v1373
    %v1718 = vpack.c.b16 %v1382, %v1374
    %v1719 = vpack.c.b16 %v1391, %v1383
    %v1720 = vpack.c.b16 %v1392, %v1384
    %v1721 = vpack.c.b16 %v1393, %v1385
    %v1722 = vpack.c.b16 %v1394, %v1386
    %v1723 = vpack.c.b16 %v1395, %v1387
    %v1724 = vpack.c.b16 %v1396, %v1388
    %v1725 = vpack.c.b16 %v1397, %v1389
    %v1726 = vpack.c.b16 %v1398, %v1390
    %v1727 = vpack.c.b16 %v1407, %v1399
    %v1728 = vpack.c.b16 %v1408, %v1400
    %v1729 = vpack.c.b16 %v1409, %v1401
    %v1730 = vpack.c.b16 %v1410, %v1402
    %v1731 = vpack.c.b16 %v1411, %v1403
    %v1732 = vpack.c.b16 %v1412, %v1404
    %v1733 = vpack.c.b16 %v1413, %v1405
    %v1734 = vpack.c.b16 %v1414, %v1406
    %v1735 = vpack.c.b16 %v1423, %v1415
    %v1736 = vpack.c.b16 %v1424, %v1416
    %v1737 = vpack.c.b16 %v1425, %v1417
    %v1738 = vpack.c.b16 %v1426, %v1418
    %v1739 = vpack.c.b16 %v1427, %v1419
    %v1740 = vpack.c.b16 %v1428, %v1420
    %v1741 = vpack.c.b16 %v1429, %v1421
    %v1742 = vpack.c.b16 %v1430, %v1422
    %v1743 = vpack.c.b16 %v1439, %v1431
    %v1744 = vpack.c.b16 %v1440, %v1432
    %v1745 = vpack.c.b16 %v1441, %v1433
    %v1746 = vpack.c.b16 %v1442, %v1434
    %v1747 = vpack.c.b16 %v1443, %v1435
    %v1748 = vpack.c.b16 %v1444, %v1436
    %v1749 = vpack.c.b16 %v1445, %v1437
    %v1750 = vpack.c.b16 %v1446, %v1438
    %v1751 = vpack.c.b16 %v1455, %v1447
    %v1752 = vpack.c.b16 %v1456, %v1448
    %v1753 = vpack.c.b16 %v1457, %v1449
    %v1754 = vpack.c.b16 %v1458, %v1450
    %v1755 = vpack.c.b16 %v1459, %v1451
    %v1756 = vpack.c.b16 %v1460, %v1452
    %v1757 = vpack.c.b16 %v1461, %v1453
    %v1758 = vpack.c.b16 %v1462, %v1454
    %v1759 = vpack.c.b16 %v1471, %v1463
    %v1760 = vpack.c.b16 %v1472, %v1464
    %v1761 = vpack.c.b16 %v1473, %v1465
    %v1762 = vpack.c.b16 %v1474, %v1466
    %v1763 = vpack.c.b16 %v1475, %v1467
    %v1764 = vpack.c.b16 %v1476, %v1468
    %v1765 = vpack.c.b16 %v1477, %v1469
    %v1766 = vpack.c.b16 %v1478, %v1470
    %v1767 = vpack.c.b16 %v1487, %v1479
    %v1768 = vpack.c.b16 %v1488, %v1480
    %v1769 = vpack.c.b16 %v1489, %v1481
    %v1770 = vpack.c.b16 %v1490, %v1482
    %v1771 = vpack.c.b16 %v1491, %v1483
    %v1772 = vpack.c.b16 %v1492, %v1484
    %v1773 = vpack.c.b16 %v1493, %v1485
    %v1774 = vpack.c.b16 %v1494, %v1486
    %v1775 = vpack.c.b16 %v1503, %v1495
    %v1776 = vpack.c.b16 %v1504, %v1496
    %v1777 = vpack.c.b16 %v1505, %v1497
    %v1778 = vpack.c.b16 %v1506, %v1498
    %v1779 = vpack.c.b16 %v1507, %v1499
    %v1780 = vpack.c.b16 %v1508, %v1500
    %v1781 = vpack.c.b16 %v1509, %v1501
    %v1782 = vpack.c.b16 %v1510, %v1502
    %v1783 = vpack.c.b16 %v1519, %v1511
    %v1784 = vpack.c.b16 %v1520, %v1512
    %v1785 = vpack.c.b16 %v1521, %v1513
    %v1786 = vpack.c.b16 %v1522, %v1514
    %v1787 = vpack.c.b16 %v1523, %v1515
    %v1788 = vpack.c.b16 %v1524, %v1516
    %v1789 = vpack.c.b16 %v1525, %v1517
    %v1790 = vpack.c.b16 %v1526, %v1518
    %v1791 = vpack.c.b16 %v1535, %v1527
    %v1792 = vpack.c.b16 %v1536, %v1528
    %v1793 = vpack.c.b16 %v1537, %v1529
    %v1794 = vpack.c.b16 %v1538, %v1530
    %v1795 = vpack.c.b16 %v1539, %v1531
    %v1796 = vpack.c.b16 %v1540, %v1532
    %v1797 = vpack.c.b16 %v1541, %v1533
    %v1798 = vpack.c.b16 %v1542, %v1534
    %2055 = vmatprep.subr.bf16.mxu0 %v1544
    %2056 = vmatpush1.bf16.msra.mxu0 %v1543
    %2057 = vmatprep.subr.bf16.mxu0 %v1552
    %2058 = vmatpush1.bf16.msra.mxu0 %v1551
    %2059 = vmatprep.subr.bf16.mxu0 %v1560
    %2060 = vmatpush1.bf16.msra.mxu0 %v1559
    %2061 = vmatprep.subr.bf16.mxu0 %v1568
    %2062 = vmatpush1.bf16.msra.mxu0 %v1567
    %2063 = vmatprep.subr.bf16.mxu0 %v1576
    %2064 = vmatpush1.bf16.msra.mxu0 %v1575
    %2065 = vmatprep.subr.bf16.mxu0 %v1584
    %2066 = vmatpush1.bf16.msra.mxu0 %v1583
    %2067 = vmatprep.subr.bf16.mxu0 %v1592
    %2068 = vmatpush1.bf16.msra.mxu0 %v1591
    %2069 = vmatprep.subr.bf16.mxu0 %v1600
    %2070 = vmatpush1.bf16.msra.mxu0 %v1599
    %2071 = vmatprep.subr.bf16.mxu0 %v1608
    %2072 = vmatpush1.bf16.msra.mxu0 %v1607
    %2073 = vmatprep.subr.bf16.mxu0 %v1616
    %2074 = vmatpush1.bf16.msra.mxu0 %v1615
    %2075 = vmatprep.subr.bf16.mxu0 %v1624
    %2076 = vmatpush1.bf16.msra.mxu0 %v1623
    %2077 = vmatprep.subr.bf16.mxu0 %v1632
    %2078 = vmatpush1.bf16.msra.mxu0 %v1631
    %2079 = vmatprep.subr.bf16.mxu0 %v1640
    %2080 = vmatpush1.bf16.msra.mxu0 %v1639
    %2081 = vmatprep.subr.bf16.mxu0 %v1648
    %2082 = vmatpush1.bf16.msra.mxu0 %v1647
    %2083 = vmatprep.subr.bf16.mxu0 %v1656
    %2084 = vmatpush1.bf16.msra.mxu0 %v1655
    %2085 = vmatprep.subr.bf16.mxu0 %v1664
    %2086 = vmatpush1.bf16.msra.mxu0 %v1663
    %2087 = vmatprep.mubr.bf16.mxu0 %v474
    %2088 = vmatmul.mubr.bf16.gmra.mrb[0].mxu0 %v473
    %v2089 = vpop.f32.mrb[0].mxu0
    %v2090 = vadd.f32 %v738, %v2089
    %v2091 = vpop.f32.mrb[0].mxu0
    %v2092 = vadd.f32 %v742, %v2091
    %v2093 = vpop.f32.mrb[0].mxu0
    %v2094 = vadd.f32 %v738, %v2093
    %v2095 = vpop.f32.mrb[0].mxu0
    %v2096 = vadd.f32 %v742, %v2095
    %2097 = vdwg.mxu0
    %2098 = vmatprep.subr.bf16.mxu0 %v1672
    %2099 = vmatpush1.bf16.msra.mxu0 %v1671
    %2100 = vmatprep.subr.bf16.mxu0 %v1680
    %2101 = vmatpush1.bf16.msra.mxu0 %v1679
    %2102 = vmatprep.subr.bf16.mxu0 %v1688
    %2103 = vmatpush1.bf16.msra.mxu0 %v1687
    %2104 = vmatprep.subr.bf16.mxu0 %v1696
    %2105 = vmatpush1.bf16.msra.mxu0 %v1695
    %2106 = vmatprep.subr.bf16.mxu0 %v1704
    %2107 = vmatpush1.bf16.msra.mxu0 %v1703
    %2108 = vmatprep.subr.bf16.mxu0 %v1712
    %2109 = vmatpush1.bf16.msra.mxu0 %v1711
    %2110 = vmatprep.subr.bf16.mxu0 %v1720
    %2111 = vmatpush1.bf16.msra.mxu0 %v1719
    %2112 = vmatprep.subr.bf16.mxu0 %v1728
    %2113 = vmatpush1.bf16.msra.mxu0 %v1727
    %2114 = vmatprep.subr.bf16.mxu0 %v1736
    %2115 = vmatpush1.bf16.msra.mxu0 %v1735
    %2116 = vmatprep.subr.bf16.mxu0 %v1744
    %2117 = vmatpush1.bf16.msra.mxu0 %v1743
    %2118 = vmatprep.subr.bf16.mxu0 %v1752
    %2119 = vmatpush1.bf16.msra.mxu0 %v1751
    %2120 = vmatprep.subr.bf16.mxu0 %v1760
    %2121 = vmatpush1.bf16.msra.mxu0 %v1759
    %2122 = vmatprep.subr.bf16.mxu0 %v1768
    %2123 = vmatpush1.bf16.msra.mxu0 %v1767
    %2124 = vmatprep.subr.bf16.mxu0 %v1776
    %2125 = vmatpush1.bf16.msra.mxu0 %v1775
    %2126 = vmatprep.subr.bf16.mxu0 %v1784
    %2127 = vmatpush1.bf16.msra.mxu0 %v1783
    %2128 = vmatprep.subr.bf16.mxu0 %v1792
    %2129 = vmatpush1.bf16.msra.mxu0 %v1791
    %2130 = vmatprep.mubr.bf16.mxu0 %v476
    %2131 = vmatmul.mubr.bf16.gmra.mrb[0].mxu0 %v475
    %v2132 = vpop.f32.mrb[0].mxu0
    %v2133 = vadd.f32 %v2090, %v2132
    %v2134 = vpop.f32.mrb[0].mxu0
    %v2135 = vadd.f32 %v2092, %v2134
    %v2136 = vpop.f32.mrb[0].mxu0
    %v2137 = vadd.f32 %v2094, %v2136
    %v2138 = vpop.f32.mrb[0].mxu0
    %v2139 = vadd.f32 %v2096, %v2138
    %2140 = vdwg.mxu0
    %2141 = vmatprep.subr.bf16.mxu0 %v1546
    %2142 = vmatpush1.bf16.msra.mxu0 %v1545
    %2143 = vmatprep.subr.bf16.mxu0 %v1554
    %2144 = vmatpush1.bf16.msra.mxu0 %v1553
    %2145 = vmatprep.subr.bf16.mxu0 %v1562
    %2146 = vmatpush1.bf16.msra.mxu0 %v1561
    %2147 = vmatprep.subr.bf16.mxu0 %v1570
    %2148 = vmatpush1.bf16.msra.mxu0 %v1569
    %2149 = vmatprep.subr.bf16.mxu0 %v1578
    %2150 = vmatpush1.bf16.msra.mxu0 %v1577
    %2151 = vmatprep.subr.bf16.mxu0 %v1586
    %2152 = vmatpush1.bf16.msra.mxu0 %v1585
    %2153 = vmatprep.subr.bf16.mxu0 %v1594
    %2154 = vmatpush1.bf16.msra.mxu0 %v1593
    %2155 = vmatprep.subr.bf16.mxu0 %v1602
    %2156 = vmatpush1.bf16.msra.mxu0 %v1601
    %2157 = vmatprep.subr.bf16.mxu0 %v1610
    %2158 = vmatpush1.bf16.msra.mxu0 %v1609
    %2159 = vmatprep.subr.bf16.mxu0 %v1618
    %2160 = vmatpush1.bf16.msra.mxu0 %v1617
    %2161 = vmatprep.subr.bf16.mxu0 %v1626
    %2162 = vmatpush1.bf16.msra.mxu0 %v1625
    %2163 = vmatprep.subr.bf16.mxu0 %v1634
    %2164 = vmatpush1.bf16.msra.mxu0 %v1633
    %2165 = vmatprep.subr.bf16.mxu0 %v1642
    %2166 = vmatpush1.bf16.msra.mxu0 %v1641
    %2167 = vmatprep.subr.bf16.mxu0 %v1650
    %2168 = vmatpush1.bf16.msra.mxu0 %v1649
    %2169 = vmatprep.subr.bf16.mxu0 %v1658
    %2170 = vmatpush1.bf16.msra.mxu0 %v1657
    %2171 = vmatprep.subr.bf16.mxu0 %v1666
    %2172 = vmatpush1.bf16.msra.mxu0 %v1665
    %2173 = vmatprep.mubr.bf16.mxu0 %v474
    %2174 = vmatmul.mubr.bf16.gmra.mrb[0].mxu0 %v473
    %v2175 = vpop.f32.mrb[0].mxu0
    %v2176 = vadd.f32 %v746, %v2175
    %v2177 = vpop.f32.mrb[0].mxu0
    %v2178 = vadd.f32 %v750, %v2177
    %v2179 = vpop.f32.mrb[0].mxu0
    %v2180 = vadd.f32 %v746, %v2179
    %v2181 = vpop.f32.mrb[0].mxu0
    %v2182 = vadd.f32 %v750, %v2181
    %2183 = vdwg.mxu0
    %2184 = vmatprep.subr.bf16.mxu0 %v1674
    %2185 = vmatpush1.bf16.msra.mxu0 %v1673
    %2186 = vmatprep.subr.bf16.mxu0 %v1682
    %2187 = vmatpush1.bf16.msra.mxu0 %v1681
    %2188 = vmatprep.subr.bf16.mxu0 %v1690
    %2189 = vmatpush1.bf16.msra.mxu0 %v1689
    %2190 = vmatprep.subr.bf16.mxu0 %v1698
    %2191 = vmatpush1.bf16.msra.mxu0 %v1697
    %2192 = vmatprep.subr.bf16.mxu0 %v1706
    %2193 = vmatpush1.bf16.msra.mxu0 %v1705
    %2194 = vmatprep.subr.bf16.mxu0 %v1714
    %2195 = vmatpush1.bf16.msra.mxu0 %v1713
    %2196 = vmatprep.subr.bf16.mxu0 %v1722
    %2197 = vmatpush1.bf16.msra.mxu0 %v1721
    %2198 = vmatprep.subr.bf16.mxu0 %v1730
    %2199 = vmatpush1.bf16.msra.mxu0 %v1729
    %2200 = vmatprep.subr.bf16.mxu0 %v1738
    %2201 = vmatpush1.bf16.msra.mxu0 %v1737
    %2202 = vmatprep.subr.bf16.mxu0 %v1746
    %2203 = vmatpush1.bf16.msra.mxu0 %v1745
    %2204 = vmatprep.subr.bf16.mxu0 %v1754
    %2205 = vmatpush1.bf16.msra.mxu0 %v1753
    %2206 = vmatprep.subr.bf16.mxu0 %v1762
    %2207 = vmatpush1.bf16.msra.mxu0 %v1761
    %2208 = vmatprep.subr.bf16.mxu0 %v1770
    %2209 = vmatpush1.bf16.msra.mxu0 %v1769
    %2210 = vmatprep.subr.bf16.mxu0 %v1778
    %2211 = vmatpush1.bf16.msra.mxu0 %v1777
    %2212 = vmatprep.subr.bf16.mxu0 %v1786
    %2213 = vmatpush1.bf16.msra.mxu0 %v1785
    %2214 = vmatprep.subr.bf16.mxu0 %v1794
    %2215 = vmatpush1.bf16.msra.mxu0 %v1793
    %2216 = vmatprep.mubr.bf16.mxu0 %v476
    %2217 = vmatmul.mubr.bf16.gmra.mrb[0].mxu0 %v475
    %v2218 = vpop.f32.mrb[0].mxu0
    %v2219 = vadd.f32 %v2176, %v2218
    %v2220 = vpop.f32.mrb[0].mxu0
    %v2221 = vadd.f32 %v2178, %v2220
    %v2222 = vpop.f32.mrb[0].mxu0
    %v2223 = vadd.f32 %v2180, %v2222
    %v2224 = vpop.f32.mrb[0].mxu0
    %v2225 = vadd.f32 %v2182, %v2224
    %2226 = vdwg.mxu0
    %2227 = vmatprep.subr.bf16.mxu0 %v1548
    %2228 = vmatpush1.bf16.msra.mxu0 %v1547
    %2229 = vmatprep.subr.bf16.mxu0 %v1556
    %2230 = vmatpush1.bf16.msra.mxu0 %v1555
    %2231 = vmatprep.subr.bf16.mxu0 %v1564
    %2232 = vmatpush1.bf16.msra.mxu0 %v1563
    %2233 = vmatprep.subr.bf16.mxu0 %v1572
    %2234 = vmatpush1.bf16.msra.mxu0 %v1571
    %2235 = vmatprep.subr.bf16.mxu0 %v1580
    %2236 = vmatpush1.bf16.msra.mxu0 %v1579
    %2237 = vmatprep.subr.bf16.mxu0 %v1588
    %2238 = vmatpush1.bf16.msra.mxu0 %v1587
    %2239 = vmatprep.subr.bf16.mxu0 %v1596
    %2240 = vmatpush1.bf16.msra.mxu0 %v1595
    %2241 = vmatprep.subr.bf16.mxu0 %v1604
    %2242 = vmatpush1.bf16.msra.mxu0 %v1603
    %2243 = vmatprep.subr.bf16.mxu0 %v1612
    %2244 = vmatpush1.bf16.msra.mxu0 %v1611
    %2245 = vmatprep.subr.bf16.mxu0 %v1620
    %2246 = vmatpush1.bf16.msra.mxu0 %v1619
    %2247 = vmatprep.subr.bf16.mxu0 %v1628
    %2248 = vmatpush1.bf16.msra.mxu0 %v1627
    %2249 = vmatprep.subr.bf16.mxu0 %v1636
    %2250 = vmatpush1.bf16.msra.mxu0 %v1635
    %2251 = vmatprep.subr.bf16.mxu0 %v1644
    %2252 = vmatpush1.bf16.msra.mxu0 %v1643
    %2253 = vmatprep.subr.bf16.mxu0 %v1652
    %2254 = vmatpush1.bf16.msra.mxu0 %v1651
    %2255 = vmatprep.subr.bf16.mxu0 %v1660
    %2256 = vmatpush1.bf16.msra.mxu0 %v1659
    %2257 = vmatprep.subr.bf16.mxu0 %v1668
    %2258 = vmatpush1.bf16.msra.mxu0 %v1667
    %2259 = vmatprep.mubr.bf16.mxu0 %v474
    %2260 = vmatmul.mubr.bf16.gmra.mrb[0].mxu0 %v473
    %v2261 = vpop.f32.mrb[0].mxu0
    %v2262 = vadd.f32 %v754, %v2261
    %v2263 = vpop.f32.mrb[0].mxu0
    %v2264 = vadd.f32 %v758, %v2263
    %v2265 = vpop.f32.mrb[0].mxu0
    %v2266 = vadd.f32 %v754, %v2265
    %v2267 = vpop.f32.mrb[0].mxu0
    %v2268 = vadd.f32 %v758, %v2267
    %2269 = vdwg.mxu0
    %2270 = vmatprep.subr.bf16.mxu0 %v1676
    %2271 = vmatpush1.bf16.msra.mxu0 %v1675
    %2272 = vmatprep.subr.bf16.mxu0 %v1684
    %2273 = vmatpush1.bf16.msra.mxu0 %v1683
    %2274 = vmatprep.subr.bf16.mxu0 %v1692
    %2275 = vmatpush1.bf16.msra.mxu0 %v1691
    %2276 = vmatprep.subr.bf16.mxu0 %v1700
    %2277 = vmatpush1.bf16.msra.mxu0 %v1699
    %2278 = vmatprep.subr.bf16.mxu0 %v1708
    %2279 = vmatpush1.bf16.msra.mxu0 %v1707
    %2280 = vmatprep.subr.bf16.mxu0 %v1716
    %2281 = vmatpush1.bf16.msra.mxu0 %v1715
    %2282 = vmatprep.subr.bf16.mxu0 %v1724
    %2283 = vmatpush1.bf16.msra.mxu0 %v1723
    %2284 = vmatprep.subr.bf16.mxu0 %v1732
    %2285 = vmatpush1.bf16.msra.mxu0 %v1731
    %2286 = vmatprep.subr.bf16.mxu0 %v1740
    %2287 = vmatpush1.bf16.msra.mxu0 %v1739
    %2288 = vmatprep.subr.bf16.mxu0 %v1748
    %2289 = vmatpush1.bf16.msra.mxu0 %v1747
    %2290 = vmatprep.subr.bf16.mxu0 %v1756
    %2291 = vmatpush1.bf16.msra.mxu0 %v1755
    %2292 = vmatprep.subr.bf16.mxu0 %v1764
    %2293 = vmatpush1.bf16.msra.mxu0 %v1763
    %2294 = vmatprep.subr.bf16.mxu0 %v1772
    %2295 = vmatpush1.bf16.msra.mxu0 %v1771
    %2296 = vmatprep.subr.bf16.mxu0 %v1780
    %2297 = vmatpush1.bf16.msra.mxu0 %v1779
    %2298 = vmatprep.subr.bf16.mxu0 %v1788
    %2299 = vmatpush1.bf16.msra.mxu0 %v1787
    %2300 = vmatprep.subr.bf16.mxu0 %v1796
    %2301 = vmatpush1.bf16.msra.mxu0 %v1795
    %2302 = vmatprep.mubr.bf16.mxu0 %v476
    %2303 = vmatmul.mubr.bf16.gmra.mrb[0].mxu0 %v475
    %v2304 = vpop.f32.mrb[0].mxu0
    %v2305 = vadd.f32 %v2262, %v2304
    %v2306 = vpop.f32.mrb[0].mxu0
    %v2307 = vadd.f32 %v2264, %v2306
    %v2308 = vpop.f32.mrb[0].mxu0
    %v2309 = vadd.f32 %v2266, %v2308
    %v2310 = vpop.f32.mrb[0].mxu0
    %v2311 = vadd.f32 %v2268, %v2310
    %2312 = vdwg.mxu0
    %2313 = vmatprep.subr.bf16.mxu0 %v1550
    %2314 = vmatpush1.bf16.msra.mxu0 %v1549
    %2315 = vmatprep.subr.bf16.mxu0 %v1558
    %2316 = vmatpush1.bf16.msra.mxu0 %v1557
    %2317 = vmatprep.subr.bf16.mxu0 %v1566
    %2318 = vmatpush1.bf16.msra.mxu0 %v1565
    %2319 = vmatprep.subr.bf16.mxu0 %v1574
    %2320 = vmatpush1.bf16.msra.mxu0 %v1573
    %2321 = vmatprep.subr.bf16.mxu0 %v1582
    %2322 = vmatpush1.bf16.msra.mxu0 %v1581
    %2323 = vmatprep.subr.bf16.mxu0 %v1590
    %2324 = vmatpush1.bf16.msra.mxu0 %v1589
    %2325 = vmatprep.subr.bf16.mxu0 %v1598
    %2326 = vmatpush1.bf16.msra.mxu0 %v1597
    %2327 = vmatprep.subr.bf16.mxu0 %v1606
    %2328 = vmatpush1.bf16.msra.mxu0 %v1605
    %2329 = vmatprep.subr.bf16.mxu0 %v1614
    %2330 = vmatpush1.bf16.msra.mxu0 %v1613
    %2331 = vmatprep.subr.bf16.mxu0 %v1622
    %2332 = vmatpush1.bf16.msra.mxu0 %v1621
    %2333 = vmatprep.subr.bf16.mxu0 %v1630
    %2334 = vmatpush1.bf16.msra.mxu0 %v1629
    %2335 = vmatprep.subr.bf16.mxu0 %v1638
    %2336 = vmatpush1.bf16.msra.mxu0 %v1637
    %2337 = vmatprep.subr.bf16.mxu0 %v1646
    %2338 = vmatpush1.bf16.msra.mxu0 %v1645
    %2339 = vmatprep.subr.bf16.mxu0 %v1654
    %2340 = vmatpush1.bf16.msra.mxu0 %v1653
    %2341 = vmatprep.subr.bf16.mxu0 %v1662
    %2342 = vmatpush1.bf16.msra.mxu0 %v1661
    %2343 = vmatprep.subr.bf16.mxu0 %v1670
    %2344 = vmatpush1.bf16.msra.mxu0 %v1669
    %2345 = vmatprep.mubr.bf16.mxu0 %v474
    %2346 = vmatmul.mubr.bf16.gmra.mrb[0].mxu0 %v473
    %v2347 = vpop.f32.mrb[0].mxu0
    %v2348 = vadd.f32 %v762, %v2347
    %v2349 = vpop.f32.mrb[0].mxu0
    %v2350 = vadd.f32 %v766, %v2349
    %v2351 = vpop.f32.mrb[0].mxu0
    %v2352 = vadd.f32 %v762, %v2351
    %v2353 = vpop.f32.mrb[0].mxu0
    %v2354 = vadd.f32 %v766, %v2353
    %2355 = vdwg.mxu0
    %2356 = vmatprep.subr.bf16.mxu0 %v1678
    %2357 = vmatpush1.bf16.msra.mxu0 %v1677
    %2358 = vmatprep.subr.bf16.mxu0 %v1686
    %2359 = vmatpush1.bf16.msra.mxu0 %v1685
    %2360 = vmatprep.subr.bf16.mxu0 %v1694
    %2361 = vmatpush1.bf16.msra.mxu0 %v1693
    %2362 = vmatprep.subr.bf16.mxu0 %v1702
    %2363 = vmatpush1.bf16.msra.mxu0 %v1701
    %2364 = vmatprep.subr.bf16.mxu0 %v1710
    %2365 = vmatpush1.bf16.msra.mxu0 %v1709
    %2366 = vmatprep.subr.bf16.mxu0 %v1718
    %2367 = vmatpush1.bf16.msra.mxu0 %v1717
    %2368 = vmatprep.subr.bf16.mxu0 %v1726
    %2369 = vmatpush1.bf16.msra.mxu0 %v1725
    %2370 = vmatprep.subr.bf16.mxu0 %v1734
    %2371 = vmatpush1.bf16.msra.mxu0 %v1733
    %2372 = vmatprep.subr.bf16.mxu0 %v1742
    %2373 = vmatpush1.bf16.msra.mxu0 %v1741
    %2374 = vmatprep.subr.bf16.mxu0 %v1750
    %2375 = vmatpush1.bf16.msra.mxu0 %v1749
    %2376 = vmatprep.subr.bf16.mxu0 %v1758
    %2377 = vmatpush1.bf16.msra.mxu0 %v1757
    %2378 = vmatprep.subr.bf16.mxu0 %v1766
    %2379 = vmatpush1.bf16.msra.mxu0 %v1765
    %2380 = vmatprep.subr.bf16.mxu0 %v1774
    %2381 = vmatpush1.bf16.msra.mxu0 %v1773
    %2382 = vmatprep.subr.bf16.mxu0 %v1782
    %2383 = vmatpush1.bf16.msra.mxu0 %v1781
    %2384 = vmatprep.subr.bf16.mxu0 %v1790
    %2385 = vmatpush1.bf16.msra.mxu0 %v1789
    %2386 = vmatprep.subr.bf16.mxu0 %v1798
    %2387 = vmatpush1.bf16.msra.mxu0 %v1797
    %2388 = vmatprep.mubr.bf16.mxu0 %v476
    %2389 = vmatmul.mubr.bf16.gmra.mrb[0].mxu0 %v475
    %v2390 = vpop.f32.mrb[0].mxu0
    %v2391 = vadd.f32 %v2348, %v2390
    %v2392 = vpop.f32.mrb[0].mxu0
    %v2393 = vadd.f32 %v2350, %v2392
    %v2394 = vpop.f32.mrb[0].mxu0
    %v2395 = vadd.f32 %v2352, %v2394
    %v2396 = vpop.f32.mrb[0].mxu0
    %v2397 = vadd.f32 %v2354, %v2396
    %2398 = vdwg.mxu0
    %v2399 = vsub.f32 0.0, %v2133
    %v2400 = vsub.f32 0.0, %v2135
    %v2401 = vsub.f32 0.0, %v2219
    %v2402 = vsub.f32 0.0, %v2221
    %v2403 = vsub.f32 0.0, %v2305
    %v2404 = vsub.f32 0.0, %v2307
    %v2405 = vsub.f32 0.0, %v2391
    %v2406 = vsub.f32 0.0, %v2393
    %v2407 = vsub.f32 0.0, %v2137
    %v2408 = vsub.f32 0.0, %v2139
    %v2409 = vsub.f32 0.0, %v2223
    %v2410 = vsub.f32 0.0, %v2225
    %v2411 = vsub.f32 0.0, %v2309
    %v2412 = vsub.f32 0.0, %v2311
    %v2413 = vsub.f32 0.0, %v2395
    %v2414 = vsub.f32 0.0, %v2397
    %v2415 = vmul.f32 %v2399, 1.442695
    %v2416 = vpow.pop %v2415
    %v2417 = vmul.f32 %v2400, 1.442695
    %v2418 = vpow.pop %v2417
    %v2419 = vmul.f32 %v2401, 1.442695
    %v2420 = vpow.pop %v2419
    %v2421 = vmul.f32 %v2402, 1.442695
    %v2422 = vpow.pop %v2421
    %v2423 = vmul.f32 %v2403, 1.442695
    %v2424 = vpow.pop %v2423
    %v2425 = vmul.f32 %v2404, 1.442695
    %v2426 = vpow.pop %v2425
    %v2427 = vmul.f32 %v2405, 1.442695
    %v2428 = vpow.pop %v2427
    %v2429 = vmul.f32 %v2406, 1.442695
    %v2430 = vpow.pop %v2429
    %v2431 = vmul.f32 %v2407, 1.442695
    %v2432 = vpow.pop %v2431
    %v2433 = vmul.f32 %v2408, 1.442695
    %v2434 = vpow.pop %v2433
    %v2435 = vmul.f32 %v2409, 1.442695
    %v2436 = vpow.pop %v2435
    %v2437 = vmul.f32 %v2410, 1.442695
    %v2438 = vpow.pop %v2437
    %v2439 = vmul.f32 %v2411, 1.442695
    %v2440 = vpow.pop %v2439
    %v2441 = vmul.f32 %v2412, 1.442695
    %v2442 = vpow.pop %v2441
    %v2443 = vmul.f32 %v2413, 1.442695
    %v2444 = vpow.pop %v2443
    %v2445 = vmul.f32 %v2414, 1.442695
    %v2446 = vpow.pop %v2445
    %v2447 = vadd.f32 %v2416, 1.0
    %v2448 = vadd.f32 %v2418, 1.0
    %v2449 = vadd.f32 %v2420, 1.0
    %v2450 = vadd.f32 %v2422, 1.0
    %v2451 = vadd.f32 %v2424, 1.0
    %v2452 = vadd.f32 %v2426, 1.0
    %v2453 = vadd.f32 %v2428, 1.0
    %v2454 = vadd.f32 %v2430, 1.0
    %v2455 = vadd.f32 %v2432, 1.0
    %v2456 = vadd.f32 %v2434, 1.0
    %v2457 = vadd.f32 %v2436, 1.0
    %v2458 = vadd.f32 %v2438, 1.0
    %v2459 = vadd.f32 %v2440, 1.0
    %v2460 = vadd.f32 %v2442, 1.0
    %v2461 = vadd.f32 %v2444, 1.0
    %v2462 = vadd.f32 %v2446, 1.0
    %v2463 = vrcp.pop %v2447
    %v2464 = vrcp.pop %v2448
    %v2465 = vrcp.pop %v2449
    %v2466 = vrcp.pop %v2450
    %v2467 = vrcp.pop %v2451
    %v2468 = vrcp.pop %v2452
    %v2469 = vrcp.pop %v2453
    %v2470 = vrcp.pop %v2454
    %v2471 = vrcp.pop %v2455
    %v2472 = vrcp.pop %v2456
    %v2473 = vrcp.pop %v2457
    %v2474 = vrcp.pop %v2458
    %v2475 = vrcp.pop %v2459
    %v2476 = vrcp.pop %v2460
    %v2477 = vrcp.pop %v2461
    %v2478 = vrcp.pop %v2462
    %v2479 = vpack.c.bf16 %v2471, %v2463
    %v2480 = vpack.c.bf16 %v2472, %v2464
    %v2481 = vpack.c.bf16 %v2473, %v2465
    %v2482 = vpack.c.bf16 %v2474, %v2466
    %v2483 = vpack.c.bf16 %v2475, %v2467
    %v2484 = vpack.c.bf16 %v2476, %v2468
    %v2485 = vpack.c.bf16 %v2477, %v2469
    %v2486 = vpack.c.bf16 %v2478, %v2470
    %v2495 = vunpack.c.l.b16 %v2479
    %v2496 = vunpack.c.l.b16 %v2480
    %v2497 = vunpack.c.l.b16 %v2481
    %v2498 = vunpack.c.l.b16 %v2482
    %v2499 = vunpack.c.l.b16 %v2483
    %v2500 = vunpack.c.l.b16 %v2484
    %v2501 = vunpack.c.l.b16 %v2485
    %v2502 = vunpack.c.l.b16 %v2486
    %v2503 = vunpack.c.h.b16 %v2479
    %v2504 = vunpack.c.h.b16 %v2480
    %v2505 = vunpack.c.h.b16 %v2481
    %v2506 = vunpack.c.h.b16 %v2482
    %v2507 = vunpack.c.h.b16 %v2483
    %v2508 = vunpack.c.h.b16 %v2484
    %v2509 = vunpack.c.h.b16 %v2485
    %v2510 = vunpack.c.h.b16 %v2486
    %v2511 = vpack.c.b16 %v2496, %v2495
    %v2512 = vpack.c.b16 %v2498, %v2497
    %v2513 = vpack.c.b16 %v2500, %v2499
    %v2514 = vpack.c.b16 %v2502, %v2501
    %v2515 = vpack.c.b16 %v2504, %v2503
    %v2516 = vpack.c.b16 %v2506, %v2505
    %v2517 = vpack.c.b16 %v2508, %v2507
    %v2518 = vpack.c.b16 %v2510, %v2509
    %2527 = vst [vmem:[%s7] sm:$0xff] %v2511
    %2528 = vst [vmem:[%s7 + $0x8] sm:$0xff] %v2512
    %2529 = vst [vmem:[%s7 + $0x10] sm:$0xff] %v2513
    %2530 = vst [vmem:[%s7 + $0x18] sm:$0xff] %v2514
    %2531 = vst [vmem:[%s7 + $0x20] sm:$0xff] %v2515
    %2532 = vst [vmem:[%s7 + $0x28] sm:$0xff] %v2516
    %2533 = vst [vmem:[%s7 + $0x30] sm:$0xff] %v2517
    %2534 = vst [vmem:[%s7 + $0x38] sm:$0xff] %v2518
    // Predicated region
    $region38: #{decoder_forward.1} parent=1 // pred_check
      _
    $region39: #{decoder_forward.1} parent=1 // pred_check_branch
      %2536 = sbr.rel (0) target = $region41
    $region40: #{decoder_forward.1} parent=1 // pred_region
      _
    $region41: #{decoder_forward.1} parent=1 // pred_fallthru
      _
    // Predicated region
    $region42: #{decoder_forward.1} parent=1 // pred_check
      _
    $region43: #{decoder_forward.1} parent=1 // pred_check_branch
      %2538 = sbr.rel (0) target = $region45
    $region44: #{decoder_forward.1} parent=1 // pred_region
      _
    $region45: #{decoder_forward.1} parent=1 // pred_fallthru
      _
    %2539 = vsyncpa [#allocation3], 1
    %2540 = vsyncpa [#allocation5], 1

</llo_original>
